<compile_context>
chip_gen: v5e
topology: v5e:2x2
jax: 0.10.0
libtpu: 0.0.40
codegen_flags: <defaults>
</compile_context>

<pallas_src>
import functools

import numpy as np
import jax
import jax.numpy as jnp
from jax.experimental import pallas as pl
from jax.experimental.pallas import tpu as pltpu


def dmpnn_kernel(
    x_ref, ea_ref,                      # node feats [N,Dn], edge attrs [E,De]
    Wm_ref, bm_ref,                     # mlp: Linear(node_dim, F) + LeakyReLU
    Wuv_ref,                            # fused [lin_u | lin_v]          [F,2F]
    We_ref,                             # lin_edge (no bias)             [De,F]
    wrel_ref, wroot_ref, brel_ref,      # GraphConv(F,1): rows [1,F], bias [1,1]
    Wg_ref, bg_ref,                     # lin_gout: Linear(F, F)
    watt_ref,                           # w parameter as a row           [1,F]
    Ssrc_ref, Sdst_ref, SdstT_ref,      # edge<->node one-hots (bf16)
    Alg_ref,                            # line-graph scatter-add (bf16)  [E,E]
    Bpool_ref, BpoolT_ref,              # edge->graph pooling (bf16)
    out_ref,                            # node output [N,F]
    out_stash,                          # VMEM scratch [n_iter,E,F] (bf16)
    *, n_iter, scale):
    f32 = jnp.float32
    bf16 = jnp.bfloat16
    Fp = out_ref.shape[1]

    def mm(a, b):
        return jnp.dot(a, b, preferred_element_type=f32)

    def mm_bf(struct_bf, data):
        # 0/1 structure matrix (exact in bf16) x bf16-cast data, f32 accumulate.
        return jnp.dot(struct_bf, data.astype(bf16), preferred_element_type=f32)

    # ---- mlp: Linear + LeakyReLU(0.01) -----------------------------------
    h = mm(x_ref[...], Wm_ref[...]) + bm_ref[...]
    x_in = jnp.where(h > 0, h, jnp.float32(0.01) * h)              # [N,F]

    # ---- initial edge features (fused lin_u | lin_v) ----------------------
    uv = mm(x_in, Wuv_ref[...])                                    # [N,2F]
    edge_u = uv[:, :Fp]
    edge_v = uv[:, Fp:]
    edge_uv = mm(ea_ref[...], We_ref[...])                         # [E,F]
    edge_attr = (mm_bf(Ssrc_ref[...], edge_u)
                 + mm_bf(Sdst_ref[...], edge_v)
                 + edge_uv) * jnp.float32(1.0 / 3.0)               # [E,F]

    # ---- loop-invariant hoists --------------------------------------------
    Alg = Alg_ref[...]                                             # bf16 [E,E]
    Bpool = Bpool_ref[...]                                         # bf16 [G,E]
    has_edge = BpoolT_ref[...] > 0                                 # bool [E,G]
    wrel = wrel_ref[...]                                           # [1,F]
    wroot = wroot_ref[...]                                         # [1,F]
    brel = brel_ref[...]                                           # [1,1]
    Wg = Wg_ref[...]
    bg = bg_ref[...]                                               # [1,F]
    watt = watt_ref[...]                                           # [1,F]
    neg_big = jnp.float32(-1e30)
    zero = jnp.float32(0.0)
    Gdim = has_edge.shape[1]

    # `s` always holds Alg @ out for the current `out`: one big ExExF matmul
    # per iteration, reused as both residual aggregate and GraphConv aggregate.
    s = mm_bf(Alg, edge_attr)                                      # Alg @ out_0

    logit_cols = []
    for n in range(n_iter):
        out = edge_attr + s                                        # [E,F]
        s = mm_bf(Alg, out)                                        # agg (+ next iter)
        out_stash[n] = out.astype(bf16)

        # -- GraphConv(F,1) on line graph: VPU multiply + XLU lane-sum ------
        x_conv = (jnp.sum(s * wrel + out * wroot, axis=1, keepdims=True)
                  + brel)                                          # [E,1]

        # per-graph (segment) softmax over edges, exact f32, select/reduce
        masked = jnp.where(has_edge, x_conv, neg_big)              # [E,G]
        m_row = jnp.max(masked, axis=0, keepdims=True)             # [1,G]
        m_e = jnp.sum(jnp.where(has_edge, m_row, zero),
                      axis=1, keepdims=True)                       # [E,1]
        ex = jnp.exp(x_conv - m_e)                                 # [E,1]
        den_row = jnp.sum(jnp.where(has_edge, ex, zero),
                          axis=0, keepdims=True)                   # [1,G]
        den_e = jnp.sum(jnp.where(has_edge, den_row, zero),
                        axis=1, keepdims=True)                     # [E,1]
        # guard for empty (padded) graphs: keep adjacent to the reciprocal
        inv = jnp.where(den_e > 0,
                        pl.reciprocal(den_e, approx=True), zero)   # [E,1]
        att = ex * inv                                             # [E,1]

        # global_add_pool(out * att) -> lin_gout -> tanh -> logit
        gx = mm_bf(Bpool, out * att)                               # [G,F]
        gout = jnp.tanh(mm(gx, Wg) + bg)                           # [G,F]
        logit_cols.append(jnp.sum(gout * watt, axis=1, keepdims=True)
                          * scale)                                 # [G,1]

    # ---- softmax over the n_iter axis (lane axis), per graph ---------------
    col_id_g = jax.lax.broadcasted_iota(jnp.int32, (Gdim, n_iter), 1)
    logits = jnp.zeros((Gdim, n_iter), f32)
    for n in range(n_iter):
        logits = jnp.where(col_id_g == n, logit_cols[n], logits)   # [G,n_iter]
    lmax = jnp.max(logits, axis=1, keepdims=True)                  # [G,1]
    exps = jnp.exp(logits - lmax)                                  # [G,n_iter]
    den = jnp.sum(exps, axis=1, keepdims=True)                     # [G,1]
    weights = exps * pl.reciprocal(den, approx=True)               # [G,n_iter]

    # ONE graph->edge broadcast of all iteration weights
    # (== repeat_interleave of per-graph scores by edge degree)
    se_all = mm_bf(BpoolT_ref[...], weights)                       # [E,n_iter]

    col_id_e = jax.lax.broadcasted_iota(jnp.int32, (1, n_iter), 1)
    out_final = jnp.zeros_like(edge_attr)
    for n in range(n_iter):
        se_n = jnp.sum(jnp.where(col_id_e == n, se_all, zero),
                       axis=1, keepdims=True)                      # [E,1]
        out_final = out_final + out_stash[n] * se_n

    # scatter-add edges -> destination nodes, residual with x_in
    out_ref[...] = x_in + mm_bf(SdstT_ref[...], out_final)         # [N,F]


def _round_up(v, m):
    return ((v + m - 1) // m) * m


def _pad2d(a, rows, cols):
    a = jnp.asarray(a, dtype=jnp.float32)
    return jnp.pad(a, ((0, rows - a.shape[0]), (0, cols - a.shape[1])))


def _vmem_capacity_bytes(default=64 << 20):
    try:
        info = pltpu.get_tpu_info()
        return int(getattr(info, "vmem_capacity_bytes", default))
    except Exception:
        return default


def dmpnn_forward(x, edge_attr, params, structure, n_iter, n_feats):
    f32, bf16 = jnp.float32, jnp.bfloat16
    N, Dn = x.shape
    E, De = edge_attr.shape
    G = structure["Bpool"].shape[0]

    # rows padded to 16 (bf16 packs 16 sublanes/vreg -> clean (16,128) tiles
    # for the bf16 structure matrices), feature axes to lane multiples of 128
    Np, Ep, Gp = _round_up(N, 16), _round_up(E, 16), _round_up(G, 16)
    Dnp, Dep = _round_up(Dn, 128), _round_up(De, 128)
    Fp = _round_up(n_feats, 128)

    xp = _pad2d(x, Np, Dnp)
    eap = _pad2d(edge_attr, Ep, Dep)

    Wm = _pad2d(params["Wm"], Dnp, Fp)
    bm = _pad2d(params["bm"], 1, Fp)
    Wuv = jnp.concatenate([_pad2d(params["Wu"], Fp, Fp),
                           _pad2d(params["Wv"], Fp, Fp)], axis=1)    # [Fp,2Fp]
    We = _pad2d(params["We"], Dep, Fp)
    wrel = _pad2d(jnp.asarray(params["Wrel"], f32).reshape(1, -1), 1, Fp)
    wroot = _pad2d(jnp.asarray(params["Wroot"], f32).reshape(1, -1), 1, Fp)
    brel = jnp.asarray(params["brel"], dtype=f32)                    # [1,1]
    Wg = _pad2d(params["Wg"], Fp, Fp)
    bg = _pad2d(params["bg"], 1, Fp)
    watt = _pad2d(jnp.asarray(params["watt"], f32).reshape(1, -1), 1, Fp)

    Ssrc = _pad2d(structure["Ssrc"], Ep, Np).astype(bf16)
    Sdst = _pad2d(structure["Sdst"], Ep, Np).astype(bf16)
    SdstT = _pad2d(structure["SdstT"], Np, Ep).astype(bf16)
    Alg = _pad2d(structure["Alg"], Ep, Ep).astype(bf16)
    Bpool = _pad2d(structure["Bpool"], Gp, Ep).astype(bf16)
    BpoolT = _pad2d(structure["BpoolT"], Ep, Gp).astype(bf16)

    args = (xp, eap, Wm, bm, Wuv, We, wrel, wroot, brel, Wg, bg, watt,
            Ssrc, Sdst, SdstT, Alg, Bpool, BpoolT)

    # VMEM budget: actual resident footprint * modest headroom, capped below
    # this generation's physical capacity (no hard 64 MiB cap, no 2x factor --
    # there is no BlockSpec double-buffering in this grid-less kernel).
    resident = sum(int(a.size) * a.dtype.itemsize for a in args)
    resident += Np * Fp * 4                    # output
    resident += n_iter * Ep * Fp * 2           # bf16 out_stash scratch
    cap = _vmem_capacity_bytes()
    vmem_limit = int(min(cap - (8 << 20), max(8 << 20, int(1.35 * resident))))

    vmem = pl.BlockSpec(memory_space=pltpu.MemorySpace.VMEM)
    scale = float(n_feats) ** (-0.5)

    out = pl.pallas_call(
        functools.partial(dmpnn_kernel, n_iter=n_iter, scale=scale),
        out_shape=jax.ShapeDtypeStruct((Np, Fp), f32),
        in_specs=[vmem] * len(args),
        out_specs=vmem,
        scratch_shapes=[pltpu.VMEM((n_iter, Ep, Fp), bf16)],
        compiler_params=pltpu.CompilerParams(vmem_limit_bytes=vmem_limit),
    )(*args)
    return out[:N, :n_feats]


def build_graph():
    # 2 graphs, 4 nodes each, bidirectional ring -> 8 directed edges / graph
    edges = []
    for g in range(2):
        base = 4 * g
        for (u, v) in [(0, 1), (1, 2), (2, 3), (3, 0)]:
            edges.append((base + u, base + v))
            edges.append((base + v, base + u))
    edge_index = np.array(edges, dtype=np.int32).T               # [2,E]
    N, E, G = 8, edge_index.shape[1], 2
    node_batch = np.array([0] * 4 + [1] * 4, np.int32)
    edge_batch = node_batch[edge_index[0]]

    # directed line graph: edge i=(u,v) -> edge j=(v,w), no backtracking
    lg = []
    for i in range(E):
        for j in range(E):
            if (edge_index[1, i] == edge_index[0, j]
                    and edge_index[0, i] != edge_index[1, j]):
                lg.append((i, j))
    lg = np.array(lg, np.int32).T                                # [2,L]

    Ssrc = np.zeros((E, N), np.float32)
    Ssrc[np.arange(E), edge_index[0]] = 1.0
    Sdst = np.zeros((E, N), np.float32)
    Sdst[np.arange(E), edge_index[1]] = 1.0
    Alg = np.zeros((E, E), np.float32)
    for l in range(lg.shape[1]):
        Alg[lg[1, l], lg[0, l]] += 1.0
    Bpool = np.zeros((G, E), np.float32)
    Bpool[edge_batch, np.arange(E)] = 1.0

    structure = {
        "Ssrc": jnp.asarray(Ssrc),
        "Sdst": jnp.asarray(Sdst),
        "SdstT": jnp.asarray(Sdst.T.copy()),
        "Alg": jnp.asarray(Alg),
        "Bpool": jnp.asarray(Bpool),
        "BpoolT": jnp.asarray(Bpool.T.copy()),
    }
    return edge_index, edge_batch, lg, N, E, G, structure


def init_params(key, node_dim, edge_dim, n_feats):
    ks = jax.random.split(key, 12)
    nrm = lambda k, shp, s=0.1: (s * jax.random.normal(k, shp)).astype(jnp.float32)
    return {
        "Wm": nrm(ks[0], (node_dim, n_feats)),
        "bm": nrm(ks[1], (1, n_feats), 0.01),
        "Wu": nrm(ks[2], (n_feats, n_feats)),
        "Wv": nrm(ks[3], (n_feats, n_feats)),
        "We": nrm(ks[4], (edge_dim, n_feats)),
        "Wrel": nrm(ks[5], (n_feats, 1)),
        "brel": nrm(ks[6], (1, 1), 0.01),
        "Wroot": nrm(ks[7], (n_feats, 1)),
        "Wg": nrm(ks[8], (n_feats, n_feats)),
        "bg": nrm(ks[9], (1, n_feats), 0.01),
        "watt": nrm(ks[10], (n_feats, 1)),
    }


if __name__ == "__main__":
    node_dim, edge_dim, n_feats, n_iter = 16, 8, 32, 3

    edge_index, edge_batch, lg, N, E, G, structure = build_graph()

    key = jax.random.PRNGKey(0)
    kx, ke, kp = jax.random.split(key, 3)
    x = jax.random.normal(kx, (N, node_dim), dtype=jnp.float32)
    edge_attr = jax.random.normal(ke, (E, edge_dim), dtype=jnp.float32)
    params = init_params(kp, node_dim, edge_dim, n_feats)

    out = dmpnn_forward(x, edge_attr, params, structure, n_iter, n_feats)
    out = jax.block_until_ready(out)

    assert out.shape == (N, n_feats)
    assert bool(jnp.all(jnp.isfinite(out)))
    print("KERNEL_OK")
</pallas_src>

<mosaic_0001>
module attributes {stable_mosaic.version = 11 : i64} {
  func.func @dmpnn_kernel(%arg0: memref<16x128xf32, #tpu.memory_space<vmem>>, %arg1: memref<16x128xf32, #tpu.memory_space<vmem>>, %arg2: memref<128x128xf32, #tpu.memory_space<vmem>>, %arg3: memref<1x128xf32, #tpu.memory_space<vmem>>, %arg4: memref<128x256xf32, #tpu.memory_space<vmem>>, %arg5: memref<128x128xf32, #tpu.memory_space<vmem>>, %arg6: memref<1x128xf32, #tpu.memory_space<vmem>>, %arg7: memref<1x128xf32, #tpu.memory_space<vmem>>, %arg8: memref<1x1xf32, #tpu.memory_space<vmem>>, %arg9: memref<128x128xf32, #tpu.memory_space<vmem>>, %arg10: memref<1x128xf32, #tpu.memory_space<vmem>>, %arg11: memref<1x128xf32, #tpu.memory_space<vmem>>, %arg12: memref<16x16xbf16, #tpu.memory_space<vmem>>, %arg13: memref<16x16xbf16, #tpu.memory_space<vmem>>, %arg14: memref<16x16xbf16, #tpu.memory_space<vmem>>, %arg15: memref<16x16xbf16, #tpu.memory_space<vmem>>, %arg16: memref<16x16xbf16, #tpu.memory_space<vmem>>, %arg17: memref<16x16xbf16, #tpu.memory_space<vmem>>, %arg18: memref<16x128xf32, #tpu.memory_space<vmem>>, %arg19: memref<3x16x128xbf16, #tpu.memory_space<vmem>>) attributes {dimension_semantics = [], scalar_prefetch = 0 : i64, scratch_operands = 1 : i64, tpu.core_type = #tpu.core_type<tc>} {
    %c0 = arith.constant 0 : index
    %c0_0 = arith.constant 0 : index
    %0 = vector.load %arg0[%c0, %c0_0] : memref<16x128xf32, #tpu.memory_space<vmem>>, vector<16x128xf32>
    %c0_1 = arith.constant 0 : index
    %c0_2 = arith.constant 0 : index
    %1 = vector.load %arg2[%c0_1, %c0_2] : memref<128x128xf32, #tpu.memory_space<vmem>>, vector<128x128xf32>
    %cst = arith.constant dense<0.000000e+00> : vector<16x128xf32>
    %2 = tpu.matmul %0, %1, %cst {dimension_numbers = #tpu.dot_dimension_numbers<[1], [0], [0], [1], [0, 0, 1, 1], [], []>} : vector<16x128xf32>, vector<128x128xf32>, vector<16x128xf32> -> vector<16x128xf32>
    %c0_3 = arith.constant 0 : index
    %c0_4 = arith.constant 0 : index
    %3 = vector.load %arg3[%c0_3, %c0_4] : memref<1x128xf32, #tpu.memory_space<vmem>>, vector<1x128xf32>
    %4 = vector.broadcast %3 : vector<1x128xf32> to vector<16x128xf32>
    %5 = arith.addf %2, %4 : vector<16x128xf32>
    %cst_5 = arith.constant 0.000000e+00 : f32
    %6 = vector.broadcast %cst_5 : f32 to vector<16x128xf32>
    %7 = arith.cmpf ogt, %5, %6 : vector<16x128xf32>
    %cst_6 = arith.constant 0.00999999977 : f32
    %8 = vector.broadcast %cst_6 : f32 to vector<16x128xf32>
    %9 = arith.mulf %8, %5 : vector<16x128xf32>
    %10 = arith.select %7, %5, %9 : vector<16x128xi1>, vector<16x128xf32>
    %c0_7 = arith.constant 0 : index
    %c0_8 = arith.constant 0 : index
    %11 = vector.load %arg4[%c0_7, %c0_8] : memref<128x256xf32, #tpu.memory_space<vmem>>, vector<128x256xf32>
    %cst_9 = arith.constant dense<0.000000e+00> : vector<16x256xf32>
    %12 = tpu.matmul %10, %11, %cst_9 {dimension_numbers = #tpu.dot_dimension_numbers<[1], [0], [0], [1], [0, 0, 1, 1], [], []>} : vector<16x128xf32>, vector<128x256xf32>, vector<16x256xf32> -> vector<16x256xf32>
    %13 = vector.extract_strided_slice %12 {offsets = [0, 0], sizes = [16, 128], strides = [1, 1]} : vector<16x256xf32> to vector<16x128xf32>
    %14 = vector.extract_strided_slice %12 {offsets = [0, 128], sizes = [16, 128], strides = [1, 1]} : vector<16x256xf32> to vector<16x128xf32>
    %c0_10 = arith.constant 0 : index
    %c0_11 = arith.constant 0 : index
    %15 = vector.load %arg1[%c0_10, %c0_11] : memref<16x128xf32, #tpu.memory_space<vmem>>, vector<16x128xf32>
    %c0_12 = arith.constant 0 : index
    %c0_13 = arith.constant 0 : index
    %16 = vector.load %arg5[%c0_12, %c0_13] : memref<128x128xf32, #tpu.memory_space<vmem>>, vector<128x128xf32>
    %cst_14 = arith.constant dense<0.000000e+00> : vector<16x128xf32>
    %17 = tpu.matmul %15, %16, %cst_14 {dimension_numbers = #tpu.dot_dimension_numbers<[1], [0], [0], [1], [0, 0, 1, 1], [], []>} : vector<16x128xf32>, vector<128x128xf32>, vector<16x128xf32> -> vector<16x128xf32>
    %c0_15 = arith.constant 0 : index
    %c0_16 = arith.constant 0 : index
    %18 = vector.load %arg12[%c0_15, %c0_16] : memref<16x16xbf16, #tpu.memory_space<vmem>>, vector<16x16xbf16>
    %19 = arith.truncf %13 : vector<16x128xf32> to vector<16x128xbf16>
    %cst_17 = arith.constant dense<0.000000e+00> : vector<16x128xf32>
    %20 = tpu.matmul %18, %19, %cst_17 {dimension_numbers = #tpu.dot_dimension_numbers<[1], [0], [0], [1], [0, 0, 1, 1], [], []>} : vector<16x16xbf16>, vector<16x128xbf16>, vector<16x128xf32> -> vector<16x128xf32>
    %c0_18 = arith.constant 0 : index
    %c0_19 = arith.constant 0 : index
    %21 = vector.load %arg13[%c0_18, %c0_19] : memref<16x16xbf16, #tpu.memory_space<vmem>>, vector<16x16xbf16>
    %22 = arith.truncf %14 : vector<16x128xf32> to vector<16x128xbf16>
    %cst_20 = arith.constant dense<0.000000e+00> : vector<16x128xf32>
    %23 = tpu.matmul %21, %22, %cst_20 {dimension_numbers = #tpu.dot_dimension_numbers<[1], [0], [0], [1], [0, 0, 1, 1], [], []>} : vector<16x16xbf16>, vector<16x128xbf16>, vector<16x128xf32> -> vector<16x128xf32>
    %24 = arith.addf %20, %23 : vector<16x128xf32>
    %25 = arith.addf %24, %17 : vector<16x128xf32>
    %cst_21 = arith.constant 0.333333343 : f32
    %26 = vector.broadcast %cst_21 : f32 to vector<16x128xf32>
    %27 = arith.mulf %25, %26 : vector<16x128xf32>
    %c0_22 = arith.constant 0 : index
    %c0_23 = arith.constant 0 : index
    %28 = vector.load %arg15[%c0_22, %c0_23] : memref<16x16xbf16, #tpu.memory_space<vmem>>, vector<16x16xbf16>
    %c0_24 = arith.constant 0 : index
    %c0_25 = arith.constant 0 : index
    %29 = vector.load %arg16[%c0_24, %c0_25] : memref<16x16xbf16, #tpu.memory_space<vmem>>, vector<16x16xbf16>
    %c0_26 = arith.constant 0 : index
    %c0_27 = arith.constant 0 : index
    %30 = vector.load %arg17[%c0_26, %c0_27] : memref<16x16xbf16, #tpu.memory_space<vmem>>, vector<16x16xbf16>
    %cst_28 = arith.constant 0.000000e+00 : bf16
    %31 = vector.broadcast %cst_28 : bf16 to vector<16x16xbf16>
    %32 = arith.cmpf ogt, %30, %31 : vector<16x16xbf16>
    %c0_29 = arith.constant 0 : index
    %c0_30 = arith.constant 0 : index
    %33 = vector.load %arg6[%c0_29, %c0_30] : memref<1x128xf32, #tpu.memory_space<vmem>>, vector<1x128xf32>
    %c0_31 = arith.constant 0 : index
    %c0_32 = arith.constant 0 : index
    %34 = vector.load %arg7[%c0_31, %c0_32] : memref<1x128xf32, #tpu.memory_space<vmem>>, vector<1x128xf32>
    %c0_33 = arith.constant 0 : index
    %c0_34 = arith.constant 0 : index
    %35 = vector.load %arg8[%c0_33, %c0_34] : memref<1x1xf32, #tpu.memory_space<vmem>>, vector<1x1xf32>
    %c0_35 = arith.constant 0 : index
    %c0_36 = arith.constant 0 : index
    %36 = vector.load %arg9[%c0_35, %c0_36] : memref<128x128xf32, #tpu.memory_space<vmem>>, vector<128x128xf32>
    %c0_37 = arith.constant 0 : index
    %c0_38 = arith.constant 0 : index
    %37 = vector.load %arg10[%c0_37, %c0_38] : memref<1x128xf32, #tpu.memory_space<vmem>>, vector<1x128xf32>
    %c0_39 = arith.constant 0 : index
    %c0_40 = arith.constant 0 : index
    %38 = vector.load %arg11[%c0_39, %c0_40] : memref<1x128xf32, #tpu.memory_space<vmem>>, vector<1x128xf32>
    %39 = arith.truncf %27 : vector<16x128xf32> to vector<16x128xbf16>
    %cst_41 = arith.constant dense<0.000000e+00> : vector<16x128xf32>
    %40 = tpu.matmul %28, %39, %cst_41 {dimension_numbers = #tpu.dot_dimension_numbers<[1], [0], [0], [1], [0, 0, 1, 1], [], []>} : vector<16x16xbf16>, vector<16x128xbf16>, vector<16x128xf32> -> vector<16x128xf32>
    %41 = arith.addf %27, %40 : vector<16x128xf32>
    %42 = arith.truncf %41 : vector<16x128xf32> to vector<16x128xbf16>
    %cst_42 = arith.constant dense<0.000000e+00> : vector<16x128xf32>
    %43 = tpu.matmul %28, %42, %cst_42 {dimension_numbers = #tpu.dot_dimension_numbers<[1], [0], [0], [1], [0, 0, 1, 1], [], []>} : vector<16x16xbf16>, vector<16x128xbf16>, vector<16x128xf32> -> vector<16x128xf32>
    %44 = arith.truncf %41 : vector<16x128xf32> to vector<16x128xbf16>
    %c0_43 = arith.constant 0 : index
    %c0_44 = arith.constant 0 : index
    %c0_45 = arith.constant 0 : index
    %45 = vector.load %arg19[%c0_43, %c0_44, %c0_45] : memref<3x16x128xbf16, #tpu.memory_space<vmem>>, vector<1x16x128xbf16>
    %46 = vector.shape_cast %45 : vector<1x16x128xbf16> to vector<16x128xbf16>
    %47 = vector.shape_cast %44 : vector<16x128xbf16> to vector<1x16x128xbf16>
    tpu.vector_store %arg19[%c0_43, %c0_44, %c0_45], %47 {strides = array<i32>} : memref<3x16x128xbf16, #tpu.memory_space<vmem>>, vector<1x16x128xbf16>,
    %48 = vector.broadcast %33 : vector<1x128xf32> to vector<16x128xf32>
    %49 = arith.mulf %43, %48 : vector<16x128xf32>
    %50 = vector.broadcast %34 : vector<1x128xf32> to vector<16x128xf32>
    %51 = arith.mulf %41, %50 : vector<16x128xf32>
    %52 = arith.addf %49, %51 : vector<16x128xf32>
    %cst_46 = arith.constant dense<0.000000e+00> : vector<16xf32>
    %53 = vector.multi_reduction <add>, %52, %cst_46 [1] : vector<16x128xf32> to vector<16xf32>
    %54 = vector.shape_cast %53 : vector<16xf32> to vector<16x1xf32>
    %55 = vector.broadcast %35 : vector<1x1xf32> to vector<16x1xf32>
    %56 = arith.addf %54, %55 : vector<16x1xf32>
    %cst_47 = arith.constant -1.000000e+30 : f32
    %57 = vector.shape_cast %56 : vector<16x1xf32> to vector<16x1xf32>
    %58 = vector.broadcast %57 : vector<16x1xf32> to vector<16x16xf32>
    %59 = vector.broadcast %cst_47 : f32 to vector<16x16xf32>
    %60 = arith.select %32, %58, %59 : vector<16x16xi1>, vector<16x16xf32>
    %cst_48 = arith.constant dense<0xFF800000> : vector<16xf32>
    %61 = vector.multi_reduction <maximumf>, %60, %cst_48 [0] : vector<16x16xf32> to vector<16xf32>
    %62 = vector.shape_cast %61 : vector<16xf32> to vector<1x16xf32>
    %cst_49 = arith.constant 0.000000e+00 : f32
    %63 = vector.shape_cast %62 : vector<1x16xf32> to vector<1x16xf32>
    %64 = vector.broadcast %63 : vector<1x16xf32> to vector<16x16xf32>
    %65 = vector.broadcast %cst_49 : f32 to vector<16x16xf32>
    %66 = arith.select %32, %64, %65 : vector<16x16xi1>, vector<16x16xf32>
    %cst_50 = arith.constant dense<0.000000e+00> : vector<16xf32>
    %67 = vector.multi_reduction <add>, %66, %cst_50 [1] : vector<16x16xf32> to vector<16xf32>
    %68 = vector.shape_cast %67 : vector<16xf32> to vector<16x1xf32>
    %69 = arith.subf %56, %68 : vector<16x1xf32>
    %70 = math.exp %69 : vector<16x1xf32>
    %cst_51 = arith.constant 0.000000e+00 : f32
    %71 = vector.shape_cast %70 : vector<16x1xf32> to vector<16x1xf32>
    %72 = vector.broadcast %71 : vector<16x1xf32> to vector<16x16xf32>
    %73 = vector.broadcast %cst_51 : f32 to vector<16x16xf32>
    %74 = arith.select %32, %72, %73 : vector<16x16xi1>, vector<16x16xf32>
    %cst_52 = arith.constant dense<0.000000e+00> : vector<16xf32>
    %75 = vector.multi_reduction <add>, %74, %cst_52 [0] : vector<16x16xf32> to vector<16xf32>
    %76 = vector.shape_cast %75 : vector<16xf32> to vector<1x16xf32>
    %cst_53 = arith.constant 0.000000e+00 : f32
    %77 = vector.shape_cast %76 : vector<1x16xf32> to vector<1x16xf32>
    %78 = vector.broadcast %77 : vector<1x16xf32> to vector<16x16xf32>
    %79 = vector.broadcast %cst_53 : f32 to vector<16x16xf32>
    %80 = arith.select %32, %78, %79 : vector<16x16xi1>, vector<16x16xf32>
    %cst_54 = arith.constant dense<0.000000e+00> : vector<16xf32>
    %81 = vector.multi_reduction <add>, %80, %cst_54 [1] : vector<16x16xf32> to vector<16xf32>
    %82 = vector.shape_cast %81 : vector<16xf32> to vector<16x1xf32>
    %cst_55 = arith.constant 0.000000e+00 : f32
    %83 = vector.broadcast %cst_55 : f32 to vector<16x1xf32>
    %84 = arith.cmpf ogt, %82, %83 : vector<16x1xf32>
    %85 = tpu.reciprocal %82 {approx = true} : vector<16x1xf32> -> vector<16x1xf32>
    %cst_56 = arith.constant 0.000000e+00 : f32
    %86 = vector.broadcast %cst_56 : f32 to vector<16x1xf32>
    %87 = arith.select %84, %85, %86 : vector<16x1xi1>, vector<16x1xf32>
    %88 = arith.mulf %70, %87 : vector<16x1xf32>
    %89 = vector.broadcast %88 : vector<16x1xf32> to vector<16x128xf32>
    %90 = arith.mulf %41, %89 : vector<16x128xf32>
    %91 = arith.truncf %90 : vector<16x128xf32> to vector<16x128xbf16>
    %cst_57 = arith.constant dense<0.000000e+00> : vector<16x128xf32>
    %92 = tpu.matmul %29, %91, %cst_57 {dimension_numbers = #tpu.dot_dimension_numbers<[1], [0], [0], [1], [0, 0, 1, 1], [], []>} : vector<16x16xbf16>, vector<16x128xbf16>, vector<16x128xf32> -> vector<16x128xf32>
    %cst_58 = arith.constant dense<0.000000e+00> : vector<16x128xf32>
    %93 = tpu.matmul %92, %36, %cst_58 {dimension_numbers = #tpu.dot_dimension_numbers<[1], [0], [0], [1], [0, 0, 1, 1], [], []>} : vector<16x128xf32>, vector<128x128xf32>, vector<16x128xf32> -> vector<16x128xf32>
    %94 = vector.broadcast %37 : vector<1x128xf32> to vector<16x128xf32>
    %95 = arith.addf %93, %94 : vector<16x128xf32>
    %96 = math.tanh %95 : vector<16x128xf32>
    %97 = vector.broadcast %38 : vector<1x128xf32> to vector<16x128xf32>
    %98 = arith.mulf %96, %97 : vector<16x128xf32>
    %cst_59 = arith.constant dense<0.000000e+00> : vector<16xf32>
    %99 = vector.multi_reduction <add>, %98, %cst_59 [1] : vector<16x128xf32> to vector<16xf32>
    %100 = vector.shape_cast %99 : vector<16xf32> to vector<16x1xf32>
    %cst_60 = arith.constant 0.176776692 : f32
    %101 = vector.broadcast %cst_60 : f32 to vector<16x1xf32>
    %102 = arith.mulf %100, %101 : vector<16x1xf32>
    %103 = arith.addf %27, %43 : vector<16x128xf32>
    %104 = arith.truncf %103 : vector<16x128xf32> to vector<16x128xbf16>
    %cst_61 = arith.constant dense<0.000000e+00> : vector<16x128xf32>
    %105 = tpu.matmul %28, %104, %cst_61 {dimension_numbers = #tpu.dot_dimension_numbers<[1], [0], [0], [1], [0, 0, 1, 1], [], []>} : vector<16x16xbf16>, vector<16x128xbf16>, vector<16x128xf32> -> vector<16x128xf32>
    %106 = arith.truncf %103 : vector<16x128xf32> to vector<16x128xbf16>
    %c1 = arith.constant 1 : index
    %c0_62 = arith.constant 0 : index
    %c0_63 = arith.constant 0 : index
    %107 = vector.load %arg19[%c1, %c0_62, %c0_63] : memref<3x16x128xbf16, #tpu.memory_space<vmem>>, vector<1x16x128xbf16>
    %108 = vector.shape_cast %107 : vector<1x16x128xbf16> to vector<16x128xbf16>
    %109 = vector.shape_cast %106 : vector<16x128xbf16> to vector<1x16x128xbf16>
    tpu.vector_store %arg19[%c1, %c0_62, %c0_63], %109 {strides = array<i32>} : memref<3x16x128xbf16, #tpu.memory_space<vmem>>, vector<1x16x128xbf16>,
    %110 = vector.broadcast %33 : vector<1x128xf32> to vector<16x128xf32>
    %111 = arith.mulf %105, %110 : vector<16x128xf32>
    %112 = vector.broadcast %34 : vector<1x128xf32> to vector<16x128xf32>
    %113 = arith.mulf %103, %112 : vector<16x128xf32>
    %114 = arith.addf %111, %113 : vector<16x128xf32>
    %cst_64 = arith.constant dense<0.000000e+00> : vector<16xf32>
    %115 = vector.multi_reduction <add>, %114, %cst_64 [1] : vector<16x128xf32> to vector<16xf32>
    %116 = vector.shape_cast %115 : vector<16xf32> to vector<16x1xf32>
    %117 = vector.broadcast %35 : vector<1x1xf32> to vector<16x1xf32>
    %118 = arith.addf %116, %117 : vector<16x1xf32>
    %cst_65 = arith.constant -1.000000e+30 : f32
    %119 = vector.shape_cast %118 : vector<16x1xf32> to vector<16x1xf32>
    %120 = vector.broadcast %119 : vector<16x1xf32> to vector<16x16xf32>
    %121 = vector.broadcast %cst_65 : f32 to vector<16x16xf32>
    %122 = arith.select %32, %120, %121 : vector<16x16xi1>, vector<16x16xf32>
    %cst_66 = arith.constant dense<0xFF800000> : vector<16xf32>
    %123 = vector.multi_reduction <maximumf>, %122, %cst_66 [0] : vector<16x16xf32> to vector<16xf32>
    %124 = vector.shape_cast %123 : vector<16xf32> to vector<1x16xf32>
    %cst_67 = arith.constant 0.000000e+00 : f32
    %125 = vector.shape_cast %124 : vector<1x16xf32> to vector<1x16xf32>
    %126 = vector.broadcast %125 : vector<1x16xf32> to vector<16x16xf32>
    %127 = vector.broadcast %cst_67 : f32 to vector<16x16xf32>
    %128 = arith.select %32, %126, %127 : vector<16x16xi1>, vector<16x16xf32>
    %cst_68 = arith.constant dense<0.000000e+00> : vector<16xf32>
    %129 = vector.multi_reduction <add>, %128, %cst_68 [1] : vector<16x16xf32> to vector<16xf32>
    %130 = vector.shape_cast %129 : vector<16xf32> to vector<16x1xf32>
    %131 = arith.subf %118, %130 : vector<16x1xf32>
    %132 = math.exp %131 : vector<16x1xf32>
    %cst_69 = arith.constant 0.000000e+00 : f32
    %133 = vector.shape_cast %132 : vector<16x1xf32> to vector<16x1xf32>
    %134 = vector.broadcast %133 : vector<16x1xf32> to vector<16x16xf32>
    %135 = vector.broadcast %cst_69 : f32 to vector<16x16xf32>
    %136 = arith.select %32, %134, %135 : vector<16x16xi1>, vector<16x16xf32>
    %cst_70 = arith.constant dense<0.000000e+00> : vector<16xf32>
    %137 = vector.multi_reduction <add>, %136, %cst_70 [0] : vector<16x16xf32> to vector<16xf32>
    %138 = vector.shape_cast %137 : vector<16xf32> to vector<1x16xf32>
    %cst_71 = arith.constant 0.000000e+00 : f32
    %139 = vector.shape_cast %138 : vector<1x16xf32> to vector<1x16xf32>
    %140 = vector.broadcast %139 : vector<1x16xf32> to vector<16x16xf32>
    %141 = vector.broadcast %cst_71 : f32 to vector<16x16xf32>
    %142 = arith.select %32, %140, %141 : vector<16x16xi1>, vector<16x16xf32>
    %cst_72 = arith.constant dense<0.000000e+00> : vector<16xf32>
    %143 = vector.multi_reduction <add>, %142, %cst_72 [1] : vector<16x16xf32> to vector<16xf32>
    %144 = vector.shape_cast %143 : vector<16xf32> to vector<16x1xf32>
    %cst_73 = arith.constant 0.000000e+00 : f32
    %145 = vector.broadcast %cst_73 : f32 to vector<16x1xf32>
    %146 = arith.cmpf ogt, %144, %145 : vector<16x1xf32>
    %147 = tpu.reciprocal %144 {approx = true} : vector<16x1xf32> -> vector<16x1xf32>
    %cst_74 = arith.constant 0.000000e+00 : f32
    %148 = vector.broadcast %cst_74 : f32 to vector<16x1xf32>
    %149 = arith.select %146, %147, %148 : vector<16x1xi1>, vector<16x1xf32>
    %150 = arith.mulf %132, %149 : vector<16x1xf32>
    %151 = vector.broadcast %150 : vector<16x1xf32> to vector<16x128xf32>
    %152 = arith.mulf %103, %151 : vector<16x128xf32>
    %153 = arith.truncf %152 : vector<16x128xf32> to vector<16x128xbf16>
    %cst_75 = arith.constant dense<0.000000e+00> : vector<16x128xf32>
    %154 = tpu.matmul %29, %153, %cst_75 {dimension_numbers = #tpu.dot_dimension_numbers<[1], [0], [0], [1], [0, 0, 1, 1], [], []>} : vector<16x16xbf16>, vector<16x128xbf16>, vector<16x128xf32> -> vector<16x128xf32>
    %cst_76 = arith.constant dense<0.000000e+00> : vector<16x128xf32>
    %155 = tpu.matmul %154, %36, %cst_76 {dimension_numbers = #tpu.dot_dimension_numbers<[1], [0], [0], [1], [0, 0, 1, 1], [], []>} : vector<16x128xf32>, vector<128x128xf32>, vector<16x128xf32> -> vector<16x128xf32>
    %156 = vector.broadcast %37 : vector<1x128xf32> to vector<16x128xf32>
    %157 = arith.addf %155, %156 : vector<16x128xf32>
    %158 = math.tanh %157 : vector<16x128xf32>
    %159 = vector.broadcast %38 : vector<1x128xf32> to vector<16x128xf32>
    %160 = arith.mulf %158, %159 : vector<16x128xf32>
    %cst_77 = arith.constant dense<0.000000e+00> : vector<16xf32>
    %161 = vector.multi_reduction <add>, %160, %cst_77 [1] : vector<16x128xf32> to vector<16xf32>
    %162 = vector.shape_cast %161 : vector<16xf32> to vector<16x1xf32>
    %cst_78 = arith.constant 0.176776692 : f32
    %163 = vector.broadcast %cst_78 : f32 to vector<16x1xf32>
    %164 = arith.mulf %162, %163 : vector<16x1xf32>
    %165 = arith.addf %27, %105 : vector<16x128xf32>
    %166 = arith.truncf %165 : vector<16x128xf32> to vector<16x128xbf16>
    %cst_79 = arith.constant dense<0.000000e+00> : vector<16x128xf32>
    %167 = tpu.matmul %28, %166, %cst_79 {dimension_numbers = #tpu.dot_dimension_numbers<[1], [0], [0], [1], [0, 0, 1, 1], [], []>} : vector<16x16xbf16>, vector<16x128xbf16>, vector<16x128xf32> -> vector<16x128xf32>
    %168 = arith.truncf %165 : vector<16x128xf32> to vector<16x128xbf16>
    %c2 = arith.constant 2 : index
    %c0_80 = arith.constant 0 : index
    %c0_81 = arith.constant 0 : index
    %169 = vector.load %arg19[%c2, %c0_80, %c0_81] : memref<3x16x128xbf16, #tpu.memory_space<vmem>>, vector<1x16x128xbf16>
    %170 = vector.shape_cast %169 : vector<1x16x128xbf16> to vector<16x128xbf16>
    %171 = vector.shape_cast %168 : vector<16x128xbf16> to vector<1x16x128xbf16>
    tpu.vector_store %arg19[%c2, %c0_80, %c0_81], %171 {strides = array<i32>} : memref<3x16x128xbf16, #tpu.memory_space<vmem>>, vector<1x16x128xbf16>,
    %172 = vector.broadcast %33 : vector<1x128xf32> to vector<16x128xf32>
    %173 = arith.mulf %167, %172 : vector<16x128xf32>
    %174 = vector.broadcast %34 : vector<1x128xf32> to vector<16x128xf32>
    %175 = arith.mulf %165, %174 : vector<16x128xf32>
    %176 = arith.addf %173, %175 : vector<16x128xf32>
    %cst_82 = arith.constant dense<0.000000e+00> : vector<16xf32>
    %177 = vector.multi_reduction <add>, %176, %cst_82 [1] : vector<16x128xf32> to vector<16xf32>
    %178 = vector.shape_cast %177 : vector<16xf32> to vector<16x1xf32>
    %179 = vector.broadcast %35 : vector<1x1xf32> to vector<16x1xf32>
    %180 = arith.addf %178, %179 : vector<16x1xf32>
    %cst_83 = arith.constant -1.000000e+30 : f32
    %181 = vector.shape_cast %180 : vector<16x1xf32> to vector<16x1xf32>
    %182 = vector.broadcast %181 : vector<16x1xf32> to vector<16x16xf32>
    %183 = vector.broadcast %cst_83 : f32 to vector<16x16xf32>
    %184 = arith.select %32, %182, %183 : vector<16x16xi1>, vector<16x16xf32>
    %cst_84 = arith.constant dense<0xFF800000> : vector<16xf32>
    %185 = vector.multi_reduction <maximumf>, %184, %cst_84 [0] : vector<16x16xf32> to vector<16xf32>
    %186 = vector.shape_cast %185 : vector<16xf32> to vector<1x16xf32>
    %cst_85 = arith.constant 0.000000e+00 : f32
    %187 = vector.shape_cast %186 : vector<1x16xf32> to vector<1x16xf32>
    %188 = vector.broadcast %187 : vector<1x16xf32> to vector<16x16xf32>
    %189 = vector.broadcast %cst_85 : f32 to vector<16x16xf32>
    %190 = arith.select %32, %188, %189 : vector<16x16xi1>, vector<16x16xf32>
    %cst_86 = arith.constant dense<0.000000e+00> : vector<16xf32>
    %191 = vector.multi_reduction <add>, %190, %cst_86 [1] : vector<16x16xf32> to vector<16xf32>
    %192 = vector.shape_cast %191 : vector<16xf32> to vector<16x1xf32>
    %193 = arith.subf %180, %192 : vector<16x1xf32>
    %194 = math.exp %193 : vector<16x1xf32>
    %cst_87 = arith.constant 0.000000e+00 : f32
    %195 = vector.shape_cast %194 : vector<16x1xf32> to vector<16x1xf32>
    %196 = vector.broadcast %195 : vector<16x1xf32> to vector<16x16xf32>
    %197 = vector.broadcast %cst_87 : f32 to vector<16x16xf32>
    %198 = arith.select %32, %196, %197 : vector<16x16xi1>, vector<16x16xf32>
    %cst_88 = arith.constant dense<0.000000e+00> : vector<16xf32>
    %199 = vector.multi_reduction <add>, %198, %cst_88 [0] : vector<16x16xf32> to vector<16xf32>
    %200 = vector.shape_cast %199 : vector<16xf32> to vector<1x16xf32>
    %cst_89 = arith.constant 0.000000e+00 : f32
    %201 = vector.shape_cast %200 : vector<1x16xf32> to vector<1x16xf32>
    %202 = vector.broadcast %201 : vector<1x16xf32> to vector<16x16xf32>
    %203 = vector.broadcast %cst_89 : f32 to vector<16x16xf32>
    %204 = arith.select %32, %202, %203 : vector<16x16xi1>, vector<16x16xf32>
    %cst_90 = arith.constant dense<0.000000e+00> : vector<16xf32>
    %205 = vector.multi_reduction <add>, %204, %cst_90 [1] : vector<16x16xf32> to vector<16xf32>
    %206 = vector.shape_cast %205 : vector<16xf32> to vector<16x1xf32>
    %cst_91 = arith.constant 0.000000e+00 : f32
    %207 = vector.broadcast %cst_91 : f32 to vector<16x1xf32>
    %208 = arith.cmpf ogt, %206, %207 : vector<16x1xf32>
    %209 = tpu.reciprocal %206 {approx = true} : vector<16x1xf32> -> vector<16x1xf32>
    %cst_92 = arith.constant 0.000000e+00 : f32
    %210 = vector.broadcast %cst_92 : f32 to vector<16x1xf32>
    %211 = arith.select %208, %209, %210 : vector<16x1xi1>, vector<16x1xf32>
    %212 = arith.mulf %194, %211 : vector<16x1xf32>
    %213 = vector.broadcast %212 : vector<16x1xf32> to vector<16x128xf32>
    %214 = arith.mulf %165, %213 : vector<16x128xf32>
    %215 = arith.truncf %214 : vector<16x128xf32> to vector<16x128xbf16>
    %cst_93 = arith.constant dense<0.000000e+00> : vector<16x128xf32>
    %216 = tpu.matmul %29, %215, %cst_93 {dimension_numbers = #tpu.dot_dimension_numbers<[1], [0], [0], [1], [0, 0, 1, 1], [], []>} : vector<16x16xbf16>, vector<16x128xbf16>, vector<16x128xf32> -> vector<16x128xf32>
    %cst_94 = arith.constant dense<0.000000e+00> : vector<16x128xf32>
    %217 = tpu.matmul %216, %36, %cst_94 {dimension_numbers = #tpu.dot_dimension_numbers<[1], [0], [0], [1], [0, 0, 1, 1], [], []>} : vector<16x128xf32>, vector<128x128xf32>, vector<16x128xf32> -> vector<16x128xf32>
    %218 = vector.broadcast %37 : vector<1x128xf32> to vector<16x128xf32>
    %219 = arith.addf %217, %218 : vector<16x128xf32>
    %220 = math.tanh %219 : vector<16x128xf32>
    %221 = vector.broadcast %38 : vector<1x128xf32> to vector<16x128xf32>
    %222 = arith.mulf %220, %221 : vector<16x128xf32>
    %cst_95 = arith.constant dense<0.000000e+00> : vector<16xf32>
    %223 = vector.multi_reduction <add>, %222, %cst_95 [1] : vector<16x128xf32> to vector<16xf32>
    %224 = vector.shape_cast %223 : vector<16xf32> to vector<16x1xf32>
    %cst_96 = arith.constant 0.176776692 : f32
    %225 = vector.broadcast %cst_96 : f32 to vector<16x1xf32>
    %226 = arith.mulf %224, %225 : vector<16x1xf32>
    %227 = tpu.iota {dimensions = array<i32: 1>} : vector<16x3xi32>
    %cst_97 = arith.constant 0.000000e+00 : f32
    %228 = vector.broadcast %cst_97 : f32 to vector<16x3xf32>
    %c0_i32 = arith.constant 0 : i32
    %229 = vector.broadcast %c0_i32 : i32 to vector<16x3xi32>
    %230 = arith.cmpi eq, %227, %229 : vector<16x3xi32>
    %231 = vector.shape_cast %102 : vector<16x1xf32> to vector<16x1xf32>
    %232 = vector.broadcast %231 : vector<16x1xf32> to vector<16x3xf32>
    %233 = arith.select %230, %232, %228 : vector<16x3xi1>, vector<16x3xf32>
    %c1_i32 = arith.constant 1 : i32
    %234 = vector.broadcast %c1_i32 : i32 to vector<16x3xi32>
    %235 = arith.cmpi eq, %227, %234 : vector<16x3xi32>
    %236 = vector.shape_cast %164 : vector<16x1xf32> to vector<16x1xf32>
    %237 = vector.broadcast %236 : vector<16x1xf32> to vector<16x3xf32>
    %238 = arith.select %235, %237, %233 : vector<16x3xi1>, vector<16x3xf32>
    %c2_i32 = arith.constant 2 : i32
    %239 = vector.broadcast %c2_i32 : i32 to vector<16x3xi32>
    %240 = arith.cmpi eq, %227, %239 : vector<16x3xi32>
    %241 = vector.shape_cast %226 : vector<16x1xf32> to vector<16x1xf32>
    %242 = vector.broadcast %241 : vector<16x1xf32> to vector<16x3xf32>
    %243 = arith.select %240, %242, %238 : vector<16x3xi1>, vector<16x3xf32>
    %cst_98 = arith.constant dense<0xFF800000> : vector<16xf32>
    %244 = vector.multi_reduction <maximumf>, %243, %cst_98 [1] : vector<16x3xf32> to vector<16xf32>
    %245 = vector.shape_cast %244 : vector<16xf32> to vector<16x1xf32>
    %246 = vector.broadcast %245 : vector<16x1xf32> to vector<16x3xf32>
    %247 = arith.subf %243, %246 : vector<16x3xf32>
    %248 = math.exp %247 : vector<16x3xf32>
    %cst_99 = arith.constant dense<0.000000e+00> : vector<16xf32>
    %249 = vector.multi_reduction <add>, %248, %cst_99 [1] : vector<16x3xf32> to vector<16xf32>
    %250 = vector.shape_cast %249 : vector<16xf32> to vector<16x1xf32>
    %251 = tpu.reciprocal %250 {approx = true} : vector<16x1xf32> -> vector<16x1xf32>
    %252 = vector.broadcast %251 : vector<16x1xf32> to vector<16x3xf32>
    %253 = arith.mulf %248, %252 : vector<16x3xf32>
    %c0_100 = arith.constant 0 : index
    %c0_101 = arith.constant 0 : index
    %254 = vector.load %arg17[%c0_100, %c0_101] : memref<16x16xbf16, #tpu.memory_space<vmem>>, vector<16x16xbf16>
    %255 = arith.truncf %253 : vector<16x3xf32> to vector<16x3xbf16>
    %cst_102 = arith.constant dense<0.000000e+00> : vector<16x3xf32>
    %256 = tpu.matmul %254, %255, %cst_102 {dimension_numbers = #tpu.dot_dimension_numbers<[1], [0], [0], [1], [0, 0, 1, 1], [], []>} : vector<16x16xbf16>, vector<16x3xbf16>, vector<16x3xf32> -> vector<16x3xf32>
    %257 = tpu.iota {dimensions = array<i32: 1>} : vector<1x3xi32>
    %cst_103 = arith.constant 0.000000e+00 : f32
    %258 = vector.broadcast %cst_103 : f32 to vector<16x128xf32>
    %c0_i32_104 = arith.constant 0 : i32
    %259 = vector.broadcast %c0_i32_104 : i32 to vector<1x3xi32>
    %260 = arith.cmpi eq, %257, %259 : vector<1x3xi32>
    %cst_105 = arith.constant 0.000000e+00 : f32
    %261 = vector.shape_cast %260 : vector<1x3xi1> to vector<1x3xi1>
    %262 = vector.broadcast %261 : vector<1x3xi1> to vector<16x3xi1>
    %263 = vector.broadcast %cst_105 : f32 to vector<16x3xf32>
    %264 = arith.select %262, %256, %263 : vector<16x3xi1>, vector<16x3xf32>
    %cst_106 = arith.constant dense<0.000000e+00> : vector<16xf32>
    %265 = vector.multi_reduction <add>, %264, %cst_106 [1] : vector<16x3xf32> to vector<16xf32>
    %266 = vector.shape_cast %265 : vector<16xf32> to vector<16x1xf32>
    %c0_107 = arith.constant 0 : index
    %c0_108 = arith.constant 0 : index
    %c0_109 = arith.constant 0 : index
    %267 = vector.load %arg19[%c0_107, %c0_108, %c0_109] : memref<3x16x128xbf16, #tpu.memory_space<vmem>>, vector<1x16x128xbf16>
    %268 = vector.shape_cast %267 : vector<1x16x128xbf16> to vector<16x128xbf16>
    %269 = arith.extf %268 : vector<16x128xbf16> to vector<16x128xf32>
    %270 = vector.broadcast %266 : vector<16x1xf32> to vector<16x128xf32>
    %271 = arith.mulf %269, %270 : vector<16x128xf32>
    %272 = arith.addf %258, %271 : vector<16x128xf32>
    %c1_i32_110 = arith.constant 1 : i32
    %273 = vector.broadcast %c1_i32_110 : i32 to vector<1x3xi32>
    %274 = arith.cmpi eq, %257, %273 : vector<1x3xi32>
    %cst_111 = arith.constant 0.000000e+00 : f32
    %275 = vector.shape_cast %274 : vector<1x3xi1> to vector<1x3xi1>
    %276 = vector.broadcast %275 : vector<1x3xi1> to vector<16x3xi1>
    %277 = vector.broadcast %cst_111 : f32 to vector<16x3xf32>
    %278 = arith.select %276, %256, %277 : vector<16x3xi1>, vector<16x3xf32>
    %cst_112 = arith.constant dense<0.000000e+00> : vector<16xf32>
    %279 = vector.multi_reduction <add>, %278, %cst_112 [1] : vector<16x3xf32> to vector<16xf32>
    %280 = vector.shape_cast %279 : vector<16xf32> to vector<16x1xf32>
    %c1_113 = arith.constant 1 : index
    %c0_114 = arith.constant 0 : index
    %c0_115 = arith.constant 0 : index
    %281 = vector.load %arg19[%c1_113, %c0_114, %c0_115] : memref<3x16x128xbf16, #tpu.memory_space<vmem>>, vector<1x16x128xbf16>
    %282 = vector.shape_cast %281 : vector<1x16x128xbf16> to vector<16x128xbf16>
    %283 = arith.extf %282 : vector<16x128xbf16> to vector<16x128xf32>
    %284 = vector.broadcast %280 : vector<16x1xf32> to vector<16x128xf32>
    %285 = arith.mulf %283, %284 : vector<16x128xf32>
    %286 = arith.addf %272, %285 : vector<16x128xf32>
    %c2_i32_116 = arith.constant 2 : i32
    %287 = vector.broadcast %c2_i32_116 : i32 to vector<1x3xi32>
    %288 = arith.cmpi eq, %257, %287 : vector<1x3xi32>
    %cst_117 = arith.constant 0.000000e+00 : f32
    %289 = vector.shape_cast %288 : vector<1x3xi1> to vector<1x3xi1>
    %290 = vector.broadcast %289 : vector<1x3xi1> to vector<16x3xi1>
    %291 = vector.broadcast %cst_117 : f32 to vector<16x3xf32>
    %292 = arith.select %290, %256, %291 : vector<16x3xi1>, vector<16x3xf32>
    %cst_118 = arith.constant dense<0.000000e+00> : vector<16xf32>
    %293 = vector.multi_reduction <add>, %292, %cst_118 [1] : vector<16x3xf32> to vector<16xf32>
    %294 = vector.shape_cast %293 : vector<16xf32> to vector<16x1xf32>
    %c2_119 = arith.constant 2 : index
    %c0_120 = arith.constant 0 : index
    %c0_121 = arith.constant 0 : index
    %295 = vector.load %arg19[%c2_119, %c0_120, %c0_121] : memref<3x16x128xbf16, #tpu.memory_space<vmem>>, vector<1x16x128xbf16>
    %296 = vector.shape_cast %295 : vector<1x16x128xbf16> to vector<16x128xbf16>
    %297 = arith.extf %296 : vector<16x128xbf16> to vector<16x128xf32>
    %298 = vector.broadcast %294 : vector<16x1xf32> to vector<16x128xf32>
    %299 = arith.mulf %297, %298 : vector<16x128xf32>
    %300 = arith.addf %286, %299 : vector<16x128xf32>
    %c0_122 = arith.constant 0 : index
    %c0_123 = arith.constant 0 : index
    %301 = vector.load %arg14[%c0_122, %c0_123] : memref<16x16xbf16, #tpu.memory_space<vmem>>, vector<16x16xbf16>
    %302 = arith.truncf %300 : vector<16x128xf32> to vector<16x128xbf16>
    %cst_124 = arith.constant dense<0.000000e+00> : vector<16x128xf32>
    %303 = tpu.matmul %301, %302, %cst_124 {dimension_numbers = #tpu.dot_dimension_numbers<[1], [0], [0], [1], [0, 0, 1, 1], [], []>} : vector<16x16xbf16>, vector<16x128xbf16>, vector<16x128xf32> -> vector<16x128xf32>
    %304 = arith.addf %10, %303 : vector<16x128xf32>
    %c0_125 = arith.constant 0 : index
    %c0_126 = arith.constant 0 : index
    %305 = vector.load %arg18[%c0_125, %c0_126] : memref<16x128xf32, #tpu.memory_space<vmem>>, vector<16x128xf32>
    tpu.vector_store %arg18[%c0_125, %c0_126], %304 {strides = array<i32>} : memref<16x128xf32, #tpu.memory_space<vmem>>, vector<16x128xf32>,
    return
  }
}

</mosaic_0001>

<llo_original>
// kernel: tpu_custom_call.1
$region0: #{tpu_custom_call.1}
  #allocation0 [shape = 'u32[]', space=smem, size = 0x4, offset = 0x4, fixed_abs, tag = 'smem constant byte address 0x4 - core index']
  #allocation1 [shape = 'u32[72,128]{1,0:T(1,128)}', space=vmem, size = 0x9000, scoped, tag = 'internal scratch']
  #allocation2 [shape = 'bf16[3,16,128]{2,1,0:T(8,128)(2,1)}', space=vmem, size = 0x3000, scoped, tag = 'scratch operand']
  #allocation3 [shape = 'f32[1,1]{1,0:T(1,128)S(1)}', space=vmem, size = 0x200, scoped, tag = 'scoped memory for tpu_custom_call.1']
  %s0 = inlined_call_operand.hbm [shape: f32[16,128], index: 0, kind: input, shape index: {}]
  %s1 = inlined_call_operand.hbm [shape: f32[16,128], index: 1, kind: input, shape index: {}]
  %s2 = inlined_call_operand.hbm [shape: f32[128,128], index: 2, kind: input, shape index: {}]
  %s3 = inlined_call_operand.hbm [shape: f32[1,128], index: 3, kind: input, shape index: {}]
  %s4 = inlined_call_operand.hbm [shape: f32[128,256], index: 4, kind: input, shape index: {}]
  %s5 = inlined_call_operand.hbm [shape: f32[128,128], index: 5, kind: input, shape index: {}]
  %s6 = inlined_call_operand.hbm [shape: f32[1,128], index: 6, kind: input, shape index: {}]
  %s7 = inlined_call_operand.hbm [shape: f32[1,128], index: 7, kind: input, shape index: {}]
  %s8 = inlined_call_operand.<no memory space> [shape: f32[1,1], index: 8, kind: input, shape index: {}]
  %s9 = inlined_call_operand.hbm [shape: f32[128,128], index: 9, kind: input, shape index: {}]
  %s10 = inlined_call_operand.hbm [shape: f32[1,128], index: 10, kind: input, shape index: {}]
  %s11 = inlined_call_operand.hbm [shape: f32[1,128], index: 11, kind: input, shape index: {}]
  %s12 = inlined_call_operand.vmem [shape: bf16[16,16], index: 12, kind: input, shape index: {}]
  %s13 = inlined_call_operand.hbm [shape: bf16[16,16], index: 13, kind: input, shape index: {}]
  %s14 = inlined_call_operand.hbm [shape: bf16[16,16], index: 14, kind: input, shape index: {}]
  %s15 = inlined_call_operand.hbm [shape: bf16[16,16], index: 15, kind: input, shape index: {}]
  %s16 = inlined_call_operand.vmem [shape: bf16[16,16], index: 16, kind: input, shape index: {}]
  %s17 = inlined_call_operand.hbm [shape: bf16[16,16], index: 17, kind: input, shape index: {}]
  %s18 = inlined_call_operand.hbm [shape: f32[16,128], index: 18, kind: output, shape index: {}]
  %s19 = sld [smem:[#allocation0]]
  $region142: #{tpu_custom_call.1} parent=0
    _
  %s21 = ssub.s32 1, %s19
  %s22 = scalar_select 0, %s21, %s19
  %v23 = vstv %s8
  %24 = vst [vmem:[#allocation3] sm:$0x1] %v23
  $region1: #{tpu_custom_call.1} parent=0
    #allocation4 [shape = 'u8[8192]{0}', space=vmem, size = 0x2000, scoped, tag = 'input window, operand 0, single buffered']
    #allocation5 [shape = 's32[1]{0}', space=sflag, size = 0x4, scoped, tag = 'scoped memory for tpu_custom_call.1']
    #allocation6 [shape = 's32[1]{0}', space=sflag, size = 0x4, scoped, tag = 'scoped memory for tpu_custom_call.1']
    #allocation7 [shape = 'u8[8192]{0}', space=vmem, size = 0x2000, scoped, tag = 'input window, operand 1, single buffered']
    #allocation8 [shape = 's32[1]{0}', space=sflag, size = 0x4, scoped, tag = 'scoped memory for tpu_custom_call.1']
    #allocation9 [shape = 'u8[65536]{0}', space=vmem, size = 0x10000, scoped, tag = 'input window, operand 2, single buffered']
    #allocation10 [shape = 'u8[512]{0}', space=vmem, size = 0x400, scoped, tag = 'input window, operand 3, single buffered']
    #allocation11 [shape = 's32[1]{0}', space=sflag, size = 0x4, scoped, tag = 'scoped memory for tpu_custom_call.1']
    #allocation12 [shape = 'u8[131072]{0}', space=vmem, size = 0x20000, scoped, tag = 'input window, operand 4, single buffered']
    #allocation13 [shape = 'u8[65536]{0}', space=vmem, size = 0x10000, scoped, tag = 'input window, operand 5, single buffered']
    #allocation14 [shape = 's32[1]{0}', space=sflag, size = 0x4, scoped, tag = 'scoped memory for tpu_custom_call.1']
    #allocation15 [shape = 'u8[512]{0}', space=vmem, size = 0x400, scoped, tag = 'input window, operand 6, single buffered']
    #allocation16 [shape = 'u8[512]{0}', space=vmem, size = 0x400, scoped, tag = 'input window, operand 7, single buffered']
    #allocation17 [shape = 's32[1]{0}', space=sflag, size = 0x4, scoped, tag = 'scoped memory for tpu_custom_call.1']
    #allocation18 [shape = 'u8[65536]{0}', space=vmem, size = 0x10000, scoped, tag = 'input window, operand 9, single buffered']
    #allocation19 [shape = 'u8[512]{0}', space=vmem, size = 0x400, scoped, tag = 'input window, operand 10, single buffered']
    #allocation20 [shape = 's32[1]{0}', space=sflag, size = 0x4, scoped, tag = 'scoped memory for tpu_custom_call.1']
    #allocation21 [shape = 'u8[512]{0}', space=vmem, size = 0x400, scoped, tag = 'input window, operand 11, single buffered']
    #allocation22 [shape = 'u8[4096]{0}', space=vmem, size = 0x1000, scoped, tag = 'input window, operand 13, single buffered']
    #allocation23 [shape = 's32[1]{0}', space=sflag, size = 0x4, scoped, tag = 'scoped memory for tpu_custom_call.1']
    #allocation24 [shape = 'u8[4096]{0}', space=vmem, size = 0x1000, scoped, tag = 'input window, operand 14, single buffered']
    #allocation25 [shape = 'u8[4096]{0}', space=vmem, size = 0x1000, scoped, tag = 'input window, operand 15, single buffered']
    #allocation26 [shape = 's32[1]{0}', space=sflag, size = 0x4, scoped, tag = 'scoped memory for tpu_custom_call.1']
    #allocation27 [shape = 'u8[4096]{0}', space=vmem, size = 0x1000, scoped, tag = 'input window, operand 17, single buffered']
    #allocation28 [shape = 'u8[8192]{0}', space=vmem, size = 0x2000, scoped, tag = 'output window, operand 0, single buffered']
    %25 = vsyncpa [#allocation5], 0
    %26 = vsyncpa [#allocation8], 0
    %27 = vsyncpa [#allocation11], 0
    %28 = vsyncpa [#allocation14], 0
    %29 = vsyncpa [#allocation17], 0
    %30 = vsyncpa [#allocation20], 0
    %31 = vsyncpa [#allocation23], 0
    %32 = vsyncpa [#allocation26], 0
    %33 = vsyncpa [#allocation6], 0
    // Predicated region
    $region2: #{tpu_custom_call.1} parent=1 // pred_check
      _
    $region3: #{tpu_custom_call.1} parent=1 // pred_check_branch
      %35 = sbr.rel (0) target = $region5
    $region4: #{tpu_custom_call.1} parent=1 // pred_region
      %37 = vsyncadd [#allocation5], 0
      %s38 = sshll.u32 %s0, 4
      %s39 = int_to_ptr.hbm [resolvable:$true] %s38
      %s40 = sshll.u32 [#allocation4], 4
      %s41 = int_to_ptr.vmem [resolvable:$true] %s40
      %46 = dma.hbm_to_vmem [thread:$0]  %s39, 256, %s41, [#allocation5], 128, 128, 8
    $region5: #{tpu_custom_call.1} parent=1 // pred_fallthru
      _
    // Predicated region
    $region6: #{tpu_custom_call.1} parent=1 // pred_check
      _
    $region7: #{tpu_custom_call.1} parent=1 // pred_check_branch
      %48 = sbr.rel (0) target = $region9
    $region8: #{tpu_custom_call.1} parent=1 // pred_region
      %50 = vsyncadd [#allocation8], 0
      %s51 = sshll.u32 %s1, 4
      %s52 = int_to_ptr.hbm [resolvable:$true] %s51
      %s53 = sshll.u32 [#allocation7], 4
      %s54 = int_to_ptr.vmem [resolvable:$true] %s53
      %59 = dma.hbm_to_vmem [thread:$0]  %s52, 256, %s54, [#allocation8], 128, 128, 8
    $region9: #{tpu_custom_call.1} parent=1 // pred_fallthru
      _
    // Predicated region
    $region10: #{tpu_custom_call.1} parent=1 // pred_check
      _
    $region11: #{tpu_custom_call.1} parent=1 // pred_check_branch
      %61 = sbr.rel (0) target = $region13
    $region12: #{tpu_custom_call.1} parent=1 // pred_region
      %63 = vsyncadd [#allocation8], 0
      %s64 = sshll.u32 %s2, 4
      %s65 = int_to_ptr.hbm [resolvable:$true] %s64
      %s66 = sshll.u32 [#allocation9], 4
      %s67 = int_to_ptr.vmem [resolvable:$true] %s66
      %72 = dma.hbm_to_vmem [thread:$0]  %s65, 2048, %s67, [#allocation8], 128, 128, 8
    $region13: #{tpu_custom_call.1} parent=1 // pred_fallthru
      _
    // Predicated region
    $region14: #{tpu_custom_call.1} parent=1 // pred_check
      _
    $region15: #{tpu_custom_call.1} parent=1 // pred_check_branch
      %74 = sbr.rel (0) target = $region17
    $region16: #{tpu_custom_call.1} parent=1 // pred_region
      %76 = vsyncadd [#allocation11], 0
      %s78 = sshll.u32 %s3, 4
      %s79 = int_to_ptr.hbm [resolvable:$true] %s78
      %s80 = sshll.u32 [#allocation10], 4
      %s81 = int_to_ptr.vmem [resolvable:$true] %s80
      %83 = dma.hbm_to_vmem [thread:$0]  %s79, 16, %s81, [#allocation11]
    $region17: #{tpu_custom_call.1} parent=1 // pred_fallthru
      _
    // Predicated region
    $region18: #{tpu_custom_call.1} parent=1 // pred_check
      _
    $region19: #{tpu_custom_call.1} parent=1 // pred_check_branch
      %85 = sbr.rel (0) target = $region21
    $region20: #{tpu_custom_call.1} parent=1 // pred_region
      %87 = vsyncadd [#allocation11], 0
      %s88 = sshll.u32 %s4, 4
      %s89 = int_to_ptr.hbm [resolvable:$true] %s88
      %s90 = sshll.u32 [#allocation12], 4
      %s91 = int_to_ptr.vmem [resolvable:$true] %s90
      %96 = dma.hbm_to_vmem [thread:$0]  %s89, 4096, %s91, [#allocation11], 256, 256, 16
    $region21: #{tpu_custom_call.1} parent=1 // pred_fallthru
      _
    // Predicated region
    $region22: #{tpu_custom_call.1} parent=1 // pred_check
      _
    $region23: #{tpu_custom_call.1} parent=1 // pred_check_branch
      %98 = sbr.rel (0) target = $region25
    $region24: #{tpu_custom_call.1} parent=1 // pred_region
      %100 = vsyncadd [#allocation14], 0
      %s101 = sshll.u32 %s5, 4
      %s102 = int_to_ptr.hbm [resolvable:$true] %s101
      %s103 = sshll.u32 [#allocation13], 4
      %s104 = int_to_ptr.vmem [resolvable:$true] %s103
      %109 = dma.hbm_to_vmem [thread:$0]  %s102, 2048, %s104, [#allocation14], 128, 128, 8
    $region25: #{tpu_custom_call.1} parent=1 // pred_fallthru
      _
    // Predicated region
    $region26: #{tpu_custom_call.1} parent=1 // pred_check
      _
    $region27: #{tpu_custom_call.1} parent=1 // pred_check_branch
      %111 = sbr.rel (0) target = $region29
    $region28: #{tpu_custom_call.1} parent=1 // pred_region
      %113 = vsyncadd [#allocation14], 0
      %s115 = sshll.u32 %s6, 4
      %s116 = int_to_ptr.hbm [resolvable:$true] %s115
      %s117 = sshll.u32 [#allocation15], 4
      %s118 = int_to_ptr.vmem [resolvable:$true] %s117
      %120 = dma.hbm_to_vmem [thread:$0]  %s116, 16, %s118, [#allocation14]
    $region29: #{tpu_custom_call.1} parent=1 // pred_fallthru
      _
    // Predicated region
    $region30: #{tpu_custom_call.1} parent=1 // pred_check
      _
    $region31: #{tpu_custom_call.1} parent=1 // pred_check_branch
      %122 = sbr.rel (0) target = $region33
    $region32: #{tpu_custom_call.1} parent=1 // pred_region
      %124 = vsyncadd [#allocation17], 0
      %s126 = sshll.u32 %s7, 4
      %s127 = int_to_ptr.hbm [resolvable:$true] %s126
      %s128 = sshll.u32 [#allocation16], 4
      %s129 = int_to_ptr.vmem [resolvable:$true] %s128
      %131 = dma.hbm_to_vmem [thread:$0]  %s127, 16, %s129, [#allocation17]
    $region33: #{tpu_custom_call.1} parent=1 // pred_fallthru
      _
    // Predicated region
    $region34: #{tpu_custom_call.1} parent=1 // pred_check
      _
    $region35: #{tpu_custom_call.1} parent=1 // pred_check_branch
      %133 = sbr.rel (0) target = $region37
    $region36: #{tpu_custom_call.1} parent=1 // pred_region
      _
    $region37: #{tpu_custom_call.1} parent=1 // pred_fallthru
      _
    // Predicated region
    $region38: #{tpu_custom_call.1} parent=1 // pred_check
      _
    $region39: #{tpu_custom_call.1} parent=1 // pred_check_branch
      %135 = sbr.rel (0) target = $region41
    $region40: #{tpu_custom_call.1} parent=1 // pred_region
      %137 = vsyncadd [#allocation17], 0
      %s138 = sshll.u32 %s9, 4
      %s139 = int_to_ptr.hbm [resolvable:$true] %s138
      %s140 = sshll.u32 [#allocation18], 4
      %s141 = int_to_ptr.vmem [resolvable:$true] %s140
      %146 = dma.hbm_to_vmem [thread:$0]  %s139, 2048, %s141, [#allocation17], 128, 128, 8
    $region41: #{tpu_custom_call.1} parent=1 // pred_fallthru
      _
    // Predicated region
    $region42: #{tpu_custom_call.1} parent=1 // pred_check
      _
    $region43: #{tpu_custom_call.1} parent=1 // pred_check_branch
      %148 = sbr.rel (0) target = $region45
    $region44: #{tpu_custom_call.1} parent=1 // pred_region
      %150 = vsyncadd [#allocation20], 0
      %s152 = sshll.u32 %s10, 4
      %s153 = int_to_ptr.hbm [resolvable:$true] %s152
      %s154 = sshll.u32 [#allocation19], 4
      %s155 = int_to_ptr.vmem [resolvable:$true] %s154
      %157 = dma.hbm_to_vmem [thread:$0]  %s153, 16, %s155, [#allocation20]
    $region45: #{tpu_custom_call.1} parent=1 // pred_fallthru
      _
    // Predicated region
    $region46: #{tpu_custom_call.1} parent=1 // pred_check
      _
    $region47: #{tpu_custom_call.1} parent=1 // pred_check_branch
      %159 = sbr.rel (0) target = $region49
    $region48: #{tpu_custom_call.1} parent=1 // pred_region
      %161 = vsyncadd [#allocation20], 0
      %s163 = sshll.u32 %s11, 4
      %s164 = int_to_ptr.hbm [resolvable:$true] %s163
      %s165 = sshll.u32 [#allocation21], 4
      %s166 = int_to_ptr.vmem [resolvable:$true] %s165
      %168 = dma.hbm_to_vmem [thread:$0]  %s164, 16, %s166, [#allocation20]
    $region49: #{tpu_custom_call.1} parent=1 // pred_fallthru
      _
    // Predicated region
    $region50: #{tpu_custom_call.1} parent=1 // pred_check
      _
    $region51: #{tpu_custom_call.1} parent=1 // pred_check_branch
      %170 = sbr.rel (0) target = $region53
    $region52: #{tpu_custom_call.1} parent=1 // pred_region
      _
    $region53: #{tpu_custom_call.1} parent=1 // pred_fallthru
      _
    // Predicated region
    $region54: #{tpu_custom_call.1} parent=1 // pred_check
      _
    $region55: #{tpu_custom_call.1} parent=1 // pred_check_branch
      %172 = sbr.rel (0) target = $region57
    $region56: #{tpu_custom_call.1} parent=1 // pred_region
      %174 = vsyncadd [#allocation23], 0
      %s175 = sshll.u32 %s13, 4
      %s176 = int_to_ptr.hbm [resolvable:$true] %s175
      %s177 = sshll.u32 [#allocation22], 4
      %s178 = int_to_ptr.vmem [resolvable:$true] %s177
      %183 = dma.hbm_to_vmem [thread:$0]  %s176, 128, %s178, [#allocation23], 64, 64, 4
    $region57: #{tpu_custom_call.1} parent=1 // pred_fallthru
      _
    // Predicated region
    $region58: #{tpu_custom_call.1} parent=1 // pred_check
      _
    $region59: #{tpu_custom_call.1} parent=1 // pred_check_branch
      %185 = sbr.rel (0) target = $region61
    $region60: #{tpu_custom_call.1} parent=1 // pred_region
      %187 = vsyncadd [#allocation23], 0
      %s188 = sshll.u32 %s14, 4
      %s189 = int_to_ptr.hbm [resolvable:$true] %s188
      %s190 = sshll.u32 [#allocation24], 4
      %s191 = int_to_ptr.vmem [resolvable:$true] %s190
      %196 = dma.hbm_to_vmem [thread:$0]  %s189, 128, %s191, [#allocation23], 64, 64, 4
    $region61: #{tpu_custom_call.1} parent=1 // pred_fallthru
      _
    // Predicated region
    $region62: #{tpu_custom_call.1} parent=1 // pred_check
      _
    $region63: #{tpu_custom_call.1} parent=1 // pred_check_branch
      %198 = sbr.rel (0) target = $region65
    $region64: #{tpu_custom_call.1} parent=1 // pred_region
      %200 = vsyncadd [#allocation26], 0
      %s201 = sshll.u32 %s15, 4
      %s202 = int_to_ptr.hbm [resolvable:$true] %s201
      %s203 = sshll.u32 [#allocation25], 4
      %s204 = int_to_ptr.vmem [resolvable:$true] %s203
      %209 = dma.hbm_to_vmem [thread:$0]  %s202, 128, %s204, [#allocation26], 64, 64, 4
    $region65: #{tpu_custom_call.1} parent=1 // pred_fallthru
      _
    // Predicated region
    $region66: #{tpu_custom_call.1} parent=1 // pred_check
      _
    $region67: #{tpu_custom_call.1} parent=1 // pred_check_branch
      %211 = sbr.rel (0) target = $region69
    $region68: #{tpu_custom_call.1} parent=1 // pred_region
      _
    $region69: #{tpu_custom_call.1} parent=1 // pred_fallthru
      _
    // Predicated region
    $region70: #{tpu_custom_call.1} parent=1 // pred_check
      _
    $region71: #{tpu_custom_call.1} parent=1 // pred_check_branch
      %213 = sbr.rel (0) target = $region73
    $region72: #{tpu_custom_call.1} parent=1 // pred_region
      %215 = vsyncadd [#allocation26], 0
      %s216 = sshll.u32 %s17, 4
      %s217 = int_to_ptr.hbm [resolvable:$true] %s216
      %s218 = sshll.u32 [#allocation27], 4
      %s219 = int_to_ptr.vmem [resolvable:$true] %s218
      %224 = dma.hbm_to_vmem [thread:$0]  %s217, 128, %s219, [#allocation26], 64, 64, 4
    $region73: #{tpu_custom_call.1} parent=1 // pred_fallthru
      _
    // Predicated region
    $region74: #{tpu_custom_call.1} parent=1 // pred_check
      _
    $region75: #{tpu_custom_call.1} parent=1 // pred_check_branch
      %226 = sbr.rel (0) target = $region77
    $region76: #{tpu_custom_call.1} parent=1 // pred_region
      %228 = dma.done [#allocation5], 256
    $region77: #{tpu_custom_call.1} parent=1 // pred_fallthru
      _
    // Predicated region
    $region78: #{tpu_custom_call.1} parent=1 // pred_check
      _
    $region79: #{tpu_custom_call.1} parent=1 // pred_check_branch
      %230 = sbr.rel (0) target = $region81
    $region80: #{tpu_custom_call.1} parent=1 // pred_region
      %232 = dma.done [#allocation8], 256
    $region81: #{tpu_custom_call.1} parent=1 // pred_fallthru
      _
    // Predicated region
    $region82: #{tpu_custom_call.1} parent=1 // pred_check
      _
    $region83: #{tpu_custom_call.1} parent=1 // pred_check_branch
      %234 = sbr.rel (0) target = $region85
    $region84: #{tpu_custom_call.1} parent=1 // pred_region
      %236 = dma.done [#allocation8], 2048
    $region85: #{tpu_custom_call.1} parent=1 // pred_fallthru
      _
    // Predicated region
    $region86: #{tpu_custom_call.1} parent=1 // pred_check
      _
    $region87: #{tpu_custom_call.1} parent=1 // pred_check_branch
      %238 = sbr.rel (0) target = $region89
    $region88: #{tpu_custom_call.1} parent=1 // pred_region
      %240 = dma.done [#allocation11], 16
    $region89: #{tpu_custom_call.1} parent=1 // pred_fallthru
      _
    // Predicated region
    $region90: #{tpu_custom_call.1} parent=1 // pred_check
      _
    $region91: #{tpu_custom_call.1} parent=1 // pred_check_branch
      %242 = sbr.rel (0) target = $region93
    $region92: #{tpu_custom_call.1} parent=1 // pred_region
      %244 = dma.done [#allocation11], 4096
    $region93: #{tpu_custom_call.1} parent=1 // pred_fallthru
      _
    // Predicated region
    $region94: #{tpu_custom_call.1} parent=1 // pred_check
      _
    $region95: #{tpu_custom_call.1} parent=1 // pred_check_branch
      %246 = sbr.rel (0) target = $region97
    $region96: #{tpu_custom_call.1} parent=1 // pred_region
      %248 = dma.done [#allocation14], 2048
    $region97: #{tpu_custom_call.1} parent=1 // pred_fallthru
      _
    // Predicated region
    $region98: #{tpu_custom_call.1} parent=1 // pred_check
      _
    $region99: #{tpu_custom_call.1} parent=1 // pred_check_branch
      %250 = sbr.rel (0) target = $region101
    $region100: #{tpu_custom_call.1} parent=1 // pred_region
      %252 = dma.done [#allocation14], 16
    $region101: #{tpu_custom_call.1} parent=1 // pred_fallthru
      _
    // Predicated region
    $region102: #{tpu_custom_call.1} parent=1 // pred_check
      _
    $region103: #{tpu_custom_call.1} parent=1 // pred_check_branch
      %254 = sbr.rel (0) target = $region105
    $region104: #{tpu_custom_call.1} parent=1 // pred_region
      %256 = dma.done [#allocation17], 16
    $region105: #{tpu_custom_call.1} parent=1 // pred_fallthru
      _
    // Predicated region
    $region106: #{tpu_custom_call.1} parent=1 // pred_check
      _
    $region107: #{tpu_custom_call.1} parent=1 // pred_check_branch
      %258 = sbr.rel (0) target = $region109
    $region108: #{tpu_custom_call.1} parent=1 // pred_region
      %260 = dma.done [#allocation17], 2048
    $region109: #{tpu_custom_call.1} parent=1 // pred_fallthru
      _
    // Predicated region
    $region110: #{tpu_custom_call.1} parent=1 // pred_check
      _
    $region111: #{tpu_custom_call.1} parent=1 // pred_check_branch
      %262 = sbr.rel (0) target = $region113
    $region112: #{tpu_custom_call.1} parent=1 // pred_region
      %264 = dma.done [#allocation20], 16
    $region113: #{tpu_custom_call.1} parent=1 // pred_fallthru
      _
    // Predicated region
    $region114: #{tpu_custom_call.1} parent=1 // pred_check
      _
    $region115: #{tpu_custom_call.1} parent=1 // pred_check_branch
      %266 = sbr.rel (0) target = $region117
    $region116: #{tpu_custom_call.1} parent=1 // pred_region
      %268 = dma.done [#allocation20], 16
    $region117: #{tpu_custom_call.1} parent=1 // pred_fallthru
      _
    // Predicated region
    $region118: #{tpu_custom_call.1} parent=1 // pred_check
      _
    $region119: #{tpu_custom_call.1} parent=1 // pred_check_branch
      %270 = sbr.rel (0) target = $region121
    $region120: #{tpu_custom_call.1} parent=1 // pred_region
      %272 = dma.done [#allocation23], 128
    $region121: #{tpu_custom_call.1} parent=1 // pred_fallthru
      _
    // Predicated region
    $region122: #{tpu_custom_call.1} parent=1 // pred_check
      _
    $region123: #{tpu_custom_call.1} parent=1 // pred_check_branch
      %274 = sbr.rel (0) target = $region125
    $region124: #{tpu_custom_call.1} parent=1 // pred_region
      %276 = dma.done [#allocation23], 128
    $region125: #{tpu_custom_call.1} parent=1 // pred_fallthru
      _
    // Predicated region
    $region126: #{tpu_custom_call.1} parent=1 // pred_check
      _
    $region127: #{tpu_custom_call.1} parent=1 // pred_check_branch
      %278 = sbr.rel (0) target = $region129
    $region128: #{tpu_custom_call.1} parent=1 // pred_region
      %280 = dma.done [#allocation26], 128
    $region129: #{tpu_custom_call.1} parent=1 // pred_fallthru
      _
    // Predicated region
    $region130: #{tpu_custom_call.1} parent=1 // pred_check
      _
    $region131: #{tpu_custom_call.1} parent=1 // pred_check_branch
      %282 = sbr.rel (0) target = $region133
    $region132: #{tpu_custom_call.1} parent=1 // pred_region
      %284 = dma.done [#allocation26], 128
    $region133: #{tpu_custom_call.1} parent=1 // pred_fallthru
      _
    %v286 = vld [vmem:[#allocation4] sm:$0xff]
    %v287 = vld [vmem:[#allocation4 + $0x8] sm:$0xff]
    %v288 = vld [vmem:[#allocation9] sm:$0xff]
    %v289 = vld [vmem:[#allocation9 + $0x8] sm:$0xff]
    %v290 = vld [vmem:[#allocation9 + $0x10] sm:$0xff]
    %v291 = vld [vmem:[#allocation9 + $0x18] sm:$0xff]
    %v292 = vld [vmem:[#allocation9 + $0x20] sm:$0xff]
    %v293 = vld [vmem:[#allocation9 + $0x28] sm:$0xff]
    %v294 = vld [vmem:[#allocation9 + $0x30] sm:$0xff]
    %v295 = vld [vmem:[#allocation9 + $0x38] sm:$0xff]
    %v296 = vld [vmem:[#allocation9 + $0x40] sm:$0xff]
    %v297 = vld [vmem:[#allocation9 + $0x48] sm:$0xff]
    %v298 = vld [vmem:[#allocation9 + $0x50] sm:$0xff]
    %v299 = vld [vmem:[#allocation9 + $0x58] sm:$0xff]
    %v300 = vld [vmem:[#allocation9 + $0x60] sm:$0xff]
    %v301 = vld [vmem:[#allocation9 + $0x68] sm:$0xff]
    %v302 = vld [vmem:[#allocation9 + $0x70] sm:$0xff]
    %v303 = vld [vmem:[#allocation9 + $0x78] sm:$0xff]
    %v304 = vld [vmem:[#allocation10] sm:$0x1]
    %v306 = vperm.slane %v304, 0
    %308 = vmatpush.msra.mxu0 %v303
    %309 = vmatpush.msra.mxu0 %v302
    %310 = vmatpush.msra.mxu0 %v301
    %311 = vmatpush.msra.mxu0 %v300
    %312 = vmatpush.msra.mxu0 %v299
    %313 = vmatpush.msra.mxu0 %v298
    %314 = vmatpush.msra.mxu0 %v297
    %315 = vmatpush.msra.mxu0 %v296
    %316 = vmatpush.msra.mxu0 %v295
    %317 = vmatpush.msra.mxu0 %v294
    %318 = vmatpush.msra.mxu0 %v293
    %319 = vmatpush.msra.mxu0 %v292
    %320 = vmatpush.msra.mxu0 %v291
    %321 = vmatpush.msra.mxu0 %v290
    %322 = vmatpush.msra.mxu0 %v289
    %323 = vmatpush.msra.mxu0 %v288
    %324 = vmatmul.f32.gmra.mxu0 %v286
    %v325 = vpop.f32.mrf.mxu0
    %v326 = vadd.f32 %v306, %v325
    %327 = vmatmul.f32.gmra.mxu0 %v287
    %v328 = vpop.f32.mrf.mxu0
    %v329 = vadd.f32 %v306, %v328
    %330 = vdwg.mxu0
    %vm331 = vcmp.gt.f32.partialorder %v326, 0.0
    %vm332 = vcmp.gt.f32.partialorder %v329, 0.0
    %v333 = vmul.f32 %v326, 0.01
    %v334 = vmul.f32 %v329, 0.01
    %v335 = vsel %vm331, %v326, %v333
    %v336 = vsel %vm332, %v329, %v334
    %v337 = vld [vmem:[#allocation12] sm:$0xff]
    %v338 = vld [vmem:[#allocation12 + $0x8] sm:$0xff]
    %v339 = vld [vmem:[#allocation12 + $0x10] sm:$0xff]
    %v340 = vld [vmem:[#allocation12 + $0x18] sm:$0xff]
    %v341 = vld [vmem:[#allocation12 + $0x20] sm:$0xff]
    %v342 = vld [vmem:[#allocation12 + $0x28] sm:$0xff]
    %v343 = vld [vmem:[#allocation12 + $0x30] sm:$0xff]
    %v344 = vld [vmem:[#allocation12 + $0x38] sm:$0xff]
    %v345 = vld [vmem:[#allocation12 + $0x40] sm:$0xff]
    %v346 = vld [vmem:[#allocation12 + $0x48] sm:$0xff]
    %v347 = vld [vmem:[#allocation12 + $0x50] sm:$0xff]
    %v348 = vld [vmem:[#allocation12 + $0x58] sm:$0xff]
    %v349 = vld [vmem:[#allocation12 + $0x60] sm:$0xff]
    %v350 = vld [vmem:[#allocation12 + $0x68] sm:$0xff]
    %v351 = vld [vmem:[#allocation12 + $0x70] sm:$0xff]
    %v352 = vld [vmem:[#allocation12 + $0x78] sm:$0xff]
    %v353 = vld [vmem:[#allocation12 + $0x80] sm:$0xff]
    %v354 = vld [vmem:[#allocation12 + $0x88] sm:$0xff]
    %v355 = vld [vmem:[#allocation12 + $0x90] sm:$0xff]
    %v356 = vld [vmem:[#allocation12 + $0x98] sm:$0xff]
    %v357 = vld [vmem:[#allocation12 + $0xa0] sm:$0xff]
    %v358 = vld [vmem:[#allocation12 + $0xa8] sm:$0xff]
    %v359 = vld [vmem:[#allocation12 + $0xb0] sm:$0xff]
    %v360 = vld [vmem:[#allocation12 + $0xb8] sm:$0xff]
    %v361 = vld [vmem:[#allocation12 + $0xc0] sm:$0xff]
    %v362 = vld [vmem:[#allocation12 + $0xc8] sm:$0xff]
    %v363 = vld [vmem:[#allocation12 + $0xd0] sm:$0xff]
    %v364 = vld [vmem:[#allocation12 + $0xd8] sm:$0xff]
    %v365 = vld [vmem:[#allocation12 + $0xe0] sm:$0xff]
    %v366 = vld [vmem:[#allocation12 + $0xe8] sm:$0xff]
    %v367 = vld [vmem:[#allocation12 + $0xf0] sm:$0xff]
    %v368 = vld [vmem:[#allocation12 + $0xf8] sm:$0xff]
    %369 = vmatpush.msra.mxu0 %v367
    %370 = vmatpush.msra.mxu0 %v365
    %371 = vmatpush.msra.mxu0 %v363
    %372 = vmatpush.msra.mxu0 %v361
    %373 = vmatpush.msra.mxu0 %v359
    %374 = vmatpush.msra.mxu0 %v357
    %375 = vmatpush.msra.mxu0 %v355
    %376 = vmatpush.msra.mxu0 %v353
    %377 = vmatpush.msra.mxu0 %v351
    %378 = vmatpush.msra.mxu0 %v349
    %379 = vmatpush.msra.mxu0 %v347
    %380 = vmatpush.msra.mxu0 %v345
    %381 = vmatpush.msra.mxu0 %v343
    %382 = vmatpush.msra.mxu0 %v341
    %383 = vmatpush.msra.mxu0 %v339
    %384 = vmatpush.msra.mxu0 %v337
    %385 = vmatmul.f32.gmra.mxu0 %v335
    %v386 = vpop.f32.mrf.mxu0
    %v387 = vadd.f32 0.0, %v386
    %388 = vmatmul.f32.gmra.mxu0 %v336
    %v389 = vpop.f32.mrf.mxu0
    %v390 = vadd.f32 0.0, %v389
    %391 = vdwg.mxu0
    %392 = vmatpush.msra.mxu0 %v368
    %393 = vmatpush.msra.mxu0 %v366
    %394 = vmatpush.msra.mxu0 %v364
    %395 = vmatpush.msra.mxu0 %v362
    %396 = vmatpush.msra.mxu0 %v360
    %397 = vmatpush.msra.mxu0 %v358
    %398 = vmatpush.msra.mxu0 %v356
    %399 = vmatpush.msra.mxu0 %v354
    %400 = vmatpush.msra.mxu0 %v352
    %401 = vmatpush.msra.mxu0 %v350
    %402 = vmatpush.msra.mxu0 %v348
    %403 = vmatpush.msra.mxu0 %v346
    %404 = vmatpush.msra.mxu0 %v344
    %405 = vmatpush.msra.mxu0 %v342
    %406 = vmatpush.msra.mxu0 %v340
    %407 = vmatpush.msra.mxu0 %v338
    %408 = vmatmul.f32.gmra.mxu0 %v335
    %v409 = vpop.f32.mrf.mxu0
    %v410 = vadd.f32 0.0, %v409
    %411 = vmatmul.f32.gmra.mxu0 %v336
    %v412 = vpop.f32.mrf.mxu0
    %v413 = vadd.f32 0.0, %v412
    %414 = vdwg.mxu0
    %v415 = vld [vmem:[#allocation7] sm:$0xff]
    %v416 = vld [vmem:[#allocation7 + $0x8] sm:$0xff]
    %v417 = vld [vmem:[#allocation13] sm:$0xff]
    %v418 = vld [vmem:[#allocation13 + $0x8] sm:$0xff]
    %v419 = vld [vmem:[#allocation13 + $0x10] sm:$0xff]
    %v420 = vld [vmem:[#allocation13 + $0x18] sm:$0xff]
    %v421 = vld [vmem:[#allocation13 + $0x20] sm:$0xff]
    %v422 = vld [vmem:[#allocation13 + $0x28] sm:$0xff]
    %v423 = vld [vmem:[#allocation13 + $0x30] sm:$0xff]
    %v424 = vld [vmem:[#allocation13 + $0x38] sm:$0xff]
    %v425 = vld [vmem:[#allocation13 + $0x40] sm:$0xff]
    %v426 = vld [vmem:[#allocation13 + $0x48] sm:$0xff]
    %v427 = vld [vmem:[#allocation13 + $0x50] sm:$0xff]
    %v428 = vld [vmem:[#allocation13 + $0x58] sm:$0xff]
    %v429 = vld [vmem:[#allocation13 + $0x60] sm:$0xff]
    %v430 = vld [vmem:[#allocation13 + $0x68] sm:$0xff]
    %v431 = vld [vmem:[#allocation13 + $0x70] sm:$0xff]
    %v432 = vld [vmem:[#allocation13 + $0x78] sm:$0xff]
    %433 = vmatpush.msra.mxu0 %v432
    %434 = vmatpush.msra.mxu0 %v431
    %435 = vmatpush.msra.mxu0 %v430
    %436 = vmatpush.msra.mxu0 %v429
    %437 = vmatpush.msra.mxu0 %v428
    %438 = vmatpush.msra.mxu0 %v427
    %439 = vmatpush.msra.mxu0 %v426
    %440 = vmatpush.msra.mxu0 %v425
    %441 = vmatpush.msra.mxu0 %v424
    %442 = vmatpush.msra.mxu0 %v423
    %443 = vmatpush.msra.mxu0 %v422
    %444 = vmatpush.msra.mxu0 %v421
    %445 = vmatpush.msra.mxu0 %v420
    %446 = vmatpush.msra.mxu0 %v419
    %447 = vmatpush.msra.mxu0 %v418
    %448 = vmatpush.msra.mxu0 %v417
    %449 = vmatmul.f32.gmra.mxu0 %v415
    %v450 = vpop.f32.mrf.mxu0
    %v451 = vadd.f32 0.0, %v450
    %452 = vmatmul.f32.gmra.mxu0 %v416
    %v453 = vpop.f32.mrf.mxu0
    %v454 = vadd.f32 0.0, %v453
    %455 = vdwg.mxu0
    %v456 = vld [vmem:[%s12] sm:$0xf]
    %v457 = vld [vmem:[%s12 + $0x4] sm:$0xf]
    %v458 = vpack.c.bf16 %v390, %v387
    %v459 = vld [vmem:[#allocation22] sm:$0xf]
    %v460 = vld [vmem:[#allocation22 + $0x4] sm:$0xf]
    %v461 = vpack.c.bf16 %v413, %v410
    %v464 = vunpack.c.l.b16 %v459
    %v465 = vunpack.c.l.b16 %v460
    %v466 = vpack.c.b16 %v465, %v464
    %vm467 = vcmask 130048
    %v469 = vsel %vm467, %v466, 0
    %471 = vmatpush.bf16.msra.mxu0 0
    %472 = vmatpush.bf16.msra.mxu0 0
    %473 = vmatpush.bf16.msra.mxu0 0
    %474 = vmatpush.bf16.msra.mxu0 0
    %475 = vmatpush.bf16.msra.mxu0 0
    %476 = vmatpush.bf16.msra.mxu0 0
    %477 = vmatpush.bf16.msra.mxu0 0
    %478 = vmatpush.bf16.msra.mxu0 %v461
    %479 = vmatmul.bf16.gmra.mxu0 %v469
    %v480 = vpop.f32.mrf.mxu0
    %v481 = vadd.f32 0.0, %v480
    %v482 = vpop.f32.mrf.mxu0
    %v483 = vadd.f32 0.0, %v482
    %484 = vdwg.mxu0
    %v487 = vunpack.c.l.b16 %v456
    %v488 = vunpack.c.l.b16 %v457
    %v489 = vpack.c.b16 %v488, %v487
    %v491 = vsel %vm467, %v489, 0
    %493 = vmatpush.bf16.msra.mxu0 0
    %494 = vmatpush.bf16.msra.mxu0 0
    %495 = vmatpush.bf16.msra.mxu0 0
    %496 = vmatpush.bf16.msra.mxu0 0
    %497 = vmatpush.bf16.msra.mxu0 0
    %498 = vmatpush.bf16.msra.mxu0 0
    %499 = vmatpush.bf16.msra.mxu0 0
    %500 = vmatpush.bf16.msra.mxu0 %v458
    %501 = vmatmul.bf16.gmra.mxu0 %v491
    %v502 = vpop.f32.mrf.mxu0
    %v503 = vadd.f32 %v481, %v502
    %v504 = vpop.f32.mrf.mxu0
    %v505 = vadd.f32 %v483, %v504
    %506 = vdwg.mxu0
    %v507 = vadd.f32 %v503, %v451
    %v508 = vadd.f32 %v505, %v454
    %v509 = vmul.f32 %v507, 0.33333334
    %v510 = vmul.f32 %v508, 0.33333334
    %v511 = vld [vmem:[#allocation25] sm:$0xf]
    %v512 = vld [vmem:[#allocation25 + $0x4] sm:$0xf]
    %v513 = vld [vmem:[%s16] sm:$0xf]
    %v514 = vld [vmem:[%s16 + $0x4] sm:$0xf]
    %v515 = vld [vmem:[#allocation27] sm:$0xf]
    %v516 = vld [vmem:[#allocation27 + $0x4] sm:$0xf]
    %v517 = vunpack.c.l.bf16 %v515
    %v518 = vunpack.c.l.bf16 %v516
    %vm519 = vcmp.gt.f32.partialorder %v517, 0.0
    %vm520 = vcmp.gt.f32.partialorder %v518, 0.0
    %v521 = vld [vmem:[#allocation15] sm:$0x1]
    %v522 = vld [vmem:[#allocation16] sm:$0x1]
    %v523 = vld [vmem:[#allocation3] sm:$0x1]
    %v524 = vld [vmem:[#allocation18] sm:$0xff]
    %v525 = vld [vmem:[#allocation18 + $0x8] sm:$0xff]
    %v526 = vld [vmem:[#allocation18 + $0x10] sm:$0xff]
    %v527 = vld [vmem:[#allocation18 + $0x18] sm:$0xff]
    %v528 = vld [vmem:[#allocation18 + $0x20] sm:$0xff]
    %v529 = vld [vmem:[#allocation18 + $0x28] sm:$0xff]
    %v530 = vld [vmem:[#allocation18 + $0x30] sm:$0xff]
    %v531 = vld [vmem:[#allocation18 + $0x38] sm:$0xff]
    %v532 = vld [vmem:[#allocation18 + $0x40] sm:$0xff]
    %v533 = vld [vmem:[#allocation18 + $0x48] sm:$0xff]
    %v534 = vld [vmem:[#allocation18 + $0x50] sm:$0xff]
    %v535 = vld [vmem:[#allocation18 + $0x58] sm:$0xff]
    %v536 = vld [vmem:[#allocation18 + $0x60] sm:$0xff]
    %v537 = vld [vmem:[#allocation18 + $0x68] sm:$0xff]
    %v538 = vld [vmem:[#allocation18 + $0x70] sm:$0xff]
    %v539 = vld [vmem:[#allocation18 + $0x78] sm:$0xff]
    %v540 = vld [vmem:[#allocation19] sm:$0x1]
    %v541 = vld [vmem:[#allocation21] sm:$0x1]
    %v542 = vpack.c.bf16 %v510, %v509
    %v545 = vunpack.c.l.b16 %v511
    %v546 = vunpack.c.l.b16 %v512
    %v547 = vpack.c.b16 %v546, %v545
    %v549 = vsel %vm467, %v547, 0
    %551 = vmatpush.bf16.msra.mxu0 0
    %552 = vmatpush.bf16.msra.mxu0 0
    %553 = vmatpush.bf16.msra.mxu0 0
    %554 = vmatpush.bf16.msra.mxu0 0
    %555 = vmatpush.bf16.msra.mxu0 0
    %556 = vmatpush.bf16.msra.mxu0 0
    %557 = vmatpush.bf16.msra.mxu0 0
    %558 = vmatpush.bf16.msra.mxu0 %v542
    %559 = vmatmul.bf16.gmra.mxu0 %v549
    %v560 = vpop.f32.mrf.mxu0
    %v561 = vadd.f32 0.0, %v560
    %v562 = vpop.f32.mrf.mxu0
    %v563 = vadd.f32 0.0, %v562
    %564 = vdwg.mxu0
    %v565 = vadd.f32 %v509, %v561
    %v566 = vadd.f32 %v510, %v563
    %v567 = vpack.c.bf16 %v565, %v565
    %v568 = vpack.c.bf16 %v566, %v566
    %v571 = vunpack.c.l.b16 %v567
    %v572 = vunpack.c.l.b16 %v568
    %v573 = vpack.c.b16 %v572, %v571
    %575 = vmatpush.bf16.msra.mxu0 0
    %576 = vmatpush.bf16.msra.mxu0 0
    %577 = vmatpush.bf16.msra.mxu0 0
    %578 = vmatpush.bf16.msra.mxu0 0
    %579 = vmatpush.bf16.msra.mxu0 0
    %580 = vmatpush.bf16.msra.mxu0 0
    %581 = vmatpush.bf16.msra.mxu0 0
    %582 = vmatpush.bf16.msra.mxu0 %v573
    %583 = vmatmul.bf16.gmra.mxu0 %v549
    %v584 = vpop.f32.mrf.mxu0
    %v585 = vadd.f32 0.0, %v584
    %v586 = vpop.f32.mrf.mxu0
    %v587 = vadd.f32 0.0, %v586
    %588 = vdwg.mxu0
    %589 = vst [vmem:[#allocation2] sm:$0xf] %v567
    %590 = vst [vmem:[#allocation2 + $0x4] sm:$0xf] %v568
    %v592 = vperm.slane %v521, 0
    %v594 = vmul.f32 %v585, %v592
    %v595 = vmul.f32 %v587, %v592
    %v597 = vperm.slane %v522, 0
    %v599 = vmul.f32 %v565, %v597
    %v600 = vmul.f32 %v566, %v597
    %v601 = vadd.f32 %v594, %v599
    %v602 = vadd.f32 %v595, %v600
    %603 = vadd.xlane.f32.xlu0 %v601
    %v604 = vpop.xlane.xlu0 %603
    %605 = vadd.xlane.f32.xlu0 %v602
    %v606 = vpop.xlane.xlu0 %605
    %v608 = vperm.slane %v523, 0
    %v610 = vadd.f32 %v604, %v608
    %v611 = vadd.f32 %v606, %v608
    %613 = vset.pattern.permute.xlu0 0
    %614 = vperm.xlu0 %613, %v610
    %v615 = vpop.permute.xlu0 %614
    %618 = vset.pattern.permute.xlu0 0
    %619 = vperm.xlu0 %618, %v611
    %v620 = vpop.permute.xlu0 %619
    %v622 = vsel %vm519, %v615, -1e+30
    %v623 = vsel %vm520, %v620, -1e+30
    %v624 = vsel %vm467, %v622, -inf
    %v625 = vsel %vm467, %v623, -inf
    %v626 = vmax.f32 %v624, %v625
    %v627 = vrot.slane %v626, 4
    %v628 = vmax.f32 %v626, %v627
    %v629 = vrot.slane %v628, 2
    %v630 = vmax.f32 %v628, %v629
    %v631 = vrot.slane %v630, 1
    %v632 = vmax.f32 %v630, %v631
    %v633 = vsel %vm519, %v632, 0.0
    %v634 = vsel %vm520, %v632, 0.0
    %v635 = vsel %vm467, %v633, 0.0
    %636 = vadd.xlane.f32.xlu0 %v635
    %v637 = vpop.xlane.xlu0 %636
    %v638 = vsel %vm467, %v634, 0.0
    %639 = vadd.xlane.f32.xlu0 %v638
    %v640 = vpop.xlane.xlu0 %639
    %v641 = vsub.f32 %v610, %v637
    %v642 = vsub.f32 %v611, %v640
    %v643 = vmul.f32 %v641, 1.442695
    %v644 = vpow.pop %v643
    %v645 = vmul.f32 %v642, 1.442695
    %v646 = vpow.pop %v645
    %648 = vset.pattern.permute.xlu0 0
    %649 = vperm.xlu0 %648, %v644
    %v650 = vpop.permute.xlu0 %649
    %653 = vset.pattern.permute.xlu0 0
    %654 = vperm.xlu0 %653, %v646
    %v655 = vpop.permute.xlu0 %654
    %v657 = vsel %vm519, %v650, 0.0
    %v658 = vsel %vm520, %v655, 0.0
    %v659 = vsel %vm467, %v657, 0.0
    %v660 = vsel %vm467, %v658, 0.0
    %v661 = vadd.f32 %v659, %v660
    %v662 = vrot.slane %v661, 4
    %v663 = vadd.f32 %v661, %v662
    %v664 = vrot.slane %v663, 2
    %v665 = vadd.f32 %v663, %v664
    %v666 = vrot.slane %v665, 1
    %v667 = vadd.f32 %v665, %v666
    %v668 = vsel %vm519, %v667, 0.0
    %v669 = vsel %vm520, %v667, 0.0
    %v670 = vsel %vm467, %v668, 0.0
    %671 = vadd.xlane.f32.xlu0 %v670
    %v672 = vpop.xlane.xlu0 %671
    %v673 = vsel %vm467, %v669, 0.0
    %674 = vadd.xlane.f32.xlu0 %v673
    %v675 = vpop.xlane.xlu0 %674
    %vm676 = vcmp.gt.f32.partialorder %v672, 0.0
    %vm677 = vcmp.gt.f32.partialorder %v675, 0.0
    %v678 = vrcp.pop %v672
    %v679 = vrcp.pop %v675
    %v680 = vsel %vm676, %v678, 0.0
    %v681 = vsel %vm677, %v679, 0.0
    %v682 = vmul.f32 %v644, %v680
    %v683 = vmul.f32 %v646, %v681
    %685 = vset.pattern.permute.xlu0 0
    %686 = vperm.xlu0 %685, %v682
    %v687 = vpop.permute.xlu0 %686
    %690 = vset.pattern.permute.xlu0 0
    %691 = vperm.xlu0 %690, %v683
    %v692 = vpop.permute.xlu0 %691
    %v694 = vmul.f32 %v565, %v687
    %v695 = vmul.f32 %v566, %v692
    %v696 = vpack.c.bf16 %v695, %v694
    %v699 = vunpack.c.l.b16 %v513
    %v700 = vunpack.c.l.b16 %v514
    %v701 = vpack.c.b16 %v700, %v699
    %v703 = vsel %vm467, %v701, 0
    %705 = vmatpush.bf16.msra.mxu0 0
    %706 = vmatpush.bf16.msra.mxu0 0
    %707 = vmatpush.bf16.msra.mxu0 0
    %708 = vmatpush.bf16.msra.mxu0 0
    %709 = vmatpush.bf16.msra.mxu0 0
    %710 = vmatpush.bf16.msra.mxu0 0
    %711 = vmatpush.bf16.msra.mxu0 0
    %712 = vmatpush.bf16.msra.mxu0 %v696
    %713 = vmatmul.bf16.gmra.mxu0 %v703
    %v714 = vpop.f32.mrf.mxu0
    %v715 = vadd.f32 0.0, %v714
    %v716 = vpop.f32.mrf.mxu0
    %v717 = vadd.f32 0.0, %v716
    %718 = vdwg.mxu0
    %v720 = vperm.slane %v540, 0
    %722 = vmatpush.msra.mxu0 %v539
    %723 = vmatpush.msra.mxu0 %v538
    %724 = vmatpush.msra.mxu0 %v537
    %725 = vmatpush.msra.mxu0 %v536
    %726 = vmatpush.msra.mxu0 %v535
    %727 = vmatpush.msra.mxu0 %v534
    %728 = vmatpush.msra.mxu0 %v533
    %729 = vmatpush.msra.mxu0 %v532
    %730 = vmatpush.msra.mxu0 %v531
    %731 = vmatpush.msra.mxu0 %v530
    %732 = vmatpush.msra.mxu0 %v529
    %733 = vmatpush.msra.mxu0 %v528
    %734 = vmatpush.msra.mxu0 %v527
    %735 = vmatpush.msra.mxu0 %v526
    %736 = vmatpush.msra.mxu0 %v525
    %737 = vmatpush.msra.mxu0 %v524
    %738 = vmatmul.f32.gmra.mxu0 %v715
    %v739 = vpop.f32.mrf.mxu0
    %v740 = vadd.f32 %v720, %v739
    %741 = vmatmul.f32.gmra.mxu0 %v717
    %v742 = vpop.f32.mrf.mxu0
    %v743 = vadd.f32 %v720, %v742
    %744 = vdwg.mxu0
    %v745 = vtanh.pop %v740
    %v746 = vtanh.pop %v743
    %v748 = vperm.slane %v541, 0
    %v750 = vmul.f32 %v745, %v748
    %v751 = vmul.f32 %v746, %v748
    %752 = vadd.xlane.f32.xlu0 %v750
    %v753 = vpop.xlane.xlu0 %752
    %754 = vadd.xlane.f32.xlu0 %v751
    %v755 = vpop.xlane.xlu0 %754
    %v756 = vmul.f32 %v753, 0.17677669
    %v757 = vmul.f32 %v755, 0.17677669
    %v758 = vadd.f32 %v509, %v585
    %v759 = vadd.f32 %v510, %v587
    %v760 = vpack.c.bf16 %v758, %v758
    %v761 = vpack.c.bf16 %v759, %v759
    %v764 = vunpack.c.l.b16 %v760
    %v765 = vunpack.c.l.b16 %v761
    %v766 = vpack.c.b16 %v765, %v764
    %768 = vmatpush.bf16.msra.mxu0 0
    %769 = vmatpush.bf16.msra.mxu0 0
    %770 = vmatpush.bf16.msra.mxu0 0
    %771 = vmatpush.bf16.msra.mxu0 0
    %772 = vmatpush.bf16.msra.mxu0 0
    %773 = vmatpush.bf16.msra.mxu0 0
    %774 = vmatpush.bf16.msra.mxu0 0
    %775 = vmatpush.bf16.msra.mxu0 %v766
    %776 = vmatmul.bf16.gmra.mxu0 %v549
    %v777 = vpop.f32.mrf.mxu0
    %v778 = vadd.f32 0.0, %v777
    %v779 = vpop.f32.mrf.mxu0
    %v780 = vadd.f32 0.0, %v779
    %781 = vdwg.mxu0
    %s782 = scalar_lea.vmem [#allocation2], 8
    %783 = vst [vmem:[%s782] sm:$0xf] %v760
    %784 = vst [vmem:[%s782 + $0x4] sm:$0xf] %v761
    %v785 = vmul.f32 %v778, %v592
    %v786 = vmul.f32 %v780, %v592
    %v787 = vmul.f32 %v758, %v597
    %v788 = vmul.f32 %v759, %v597
    %v789 = vadd.f32 %v785, %v787
    %v790 = vadd.f32 %v786, %v788
    %791 = vadd.xlane.f32.xlu0 %v789
    %v792 = vpop.xlane.xlu0 %791
    %793 = vadd.xlane.f32.xlu0 %v790
    %v794 = vpop.xlane.xlu0 %793
    %v795 = vadd.f32 %v792, %v608
    %v796 = vadd.f32 %v794, %v608
    %798 = vset.pattern.permute.xlu0 0
    %799 = vperm.xlu0 %798, %v795
    %v800 = vpop.permute.xlu0 %799
    %803 = vset.pattern.permute.xlu0 0
    %804 = vperm.xlu0 %803, %v796
    %v805 = vpop.permute.xlu0 %804
    %v807 = vsel %vm519, %v800, -1e+30
    %v808 = vsel %vm520, %v805, -1e+30
    %v809 = vsel %vm467, %v807, -inf
    %v810 = vsel %vm467, %v808, -inf
    %v811 = vmax.f32 %v809, %v810
    %v812 = vrot.slane %v811, 4
    %v813 = vmax.f32 %v811, %v812
    %v814 = vrot.slane %v813, 2
    %v815 = vmax.f32 %v813, %v814
    %v816 = vrot.slane %v815, 1
    %v817 = vmax.f32 %v815, %v816
    %v818 = vsel %vm519, %v817, 0.0
    %v819 = vsel %vm520, %v817, 0.0
    %v820 = vsel %vm467, %v818, 0.0
    %821 = vadd.xlane.f32.xlu0 %v820
    %v822 = vpop.xlane.xlu0 %821
    %v823 = vsel %vm467, %v819, 0.0
    %824 = vadd.xlane.f32.xlu0 %v823
    %v825 = vpop.xlane.xlu0 %824
    %v826 = vsub.f32 %v795, %v822
    %v827 = vsub.f32 %v796, %v825
    %v828 = vmul.f32 %v826, 1.442695
    %v829 = vpow.pop %v828
    %v830 = vmul.f32 %v827, 1.442695
    %v831 = vpow.pop %v830
    %833 = vset.pattern.permute.xlu0 0
    %834 = vperm.xlu0 %833, %v829
    %v835 = vpop.permute.xlu0 %834
    %838 = vset.pattern.permute.xlu0 0
    %839 = vperm.xlu0 %838, %v831
    %v840 = vpop.permute.xlu0 %839
    %v842 = vsel %vm519, %v835, 0.0
    %v843 = vsel %vm520, %v840, 0.0
    %v844 = vsel %vm467, %v842, 0.0
    %v845 = vsel %vm467, %v843, 0.0
    %v846 = vadd.f32 %v844, %v845
    %v847 = vrot.slane %v846, 4
    %v848 = vadd.f32 %v846, %v847
    %v849 = vrot.slane %v848, 2
    %v850 = vadd.f32 %v848, %v849
    %v851 = vrot.slane %v850, 1
    %v852 = vadd.f32 %v850, %v851
    %v853 = vsel %vm519, %v852, 0.0
    %v854 = vsel %vm520, %v852, 0.0
    %v855 = vsel %vm467, %v853, 0.0
    %856 = vadd.xlane.f32.xlu0 %v855
    %v857 = vpop.xlane.xlu0 %856
    %v858 = vsel %vm467, %v854, 0.0
    %859 = vadd.xlane.f32.xlu0 %v858
    %v860 = vpop.xlane.xlu0 %859
    %vm861 = vcmp.gt.f32.partialorder %v857, 0.0
    %vm862 = vcmp.gt.f32.partialorder %v860, 0.0
    %v863 = vrcp.pop %v857
    %v864 = vrcp.pop %v860
    %v865 = vsel %vm861, %v863, 0.0
    %v866 = vsel %vm862, %v864, 0.0
    %v867 = vmul.f32 %v829, %v865
    %v868 = vmul.f32 %v831, %v866
    %870 = vset.pattern.permute.xlu0 0
    %871 = vperm.xlu0 %870, %v867
    %v872 = vpop.permute.xlu0 %871
    %875 = vset.pattern.permute.xlu0 0
    %876 = vperm.xlu0 %875, %v868
    %v877 = vpop.permute.xlu0 %876
    %v879 = vmul.f32 %v758, %v872
    %v880 = vmul.f32 %v759, %v877
    %v881 = vpack.c.bf16 %v880, %v879
    %882 = vmatpush.bf16.msra.mxu0 0
    %883 = vmatpush.bf16.msra.mxu0 0
    %884 = vmatpush.bf16.msra.mxu0 0
    %885 = vmatpush.bf16.msra.mxu0 0
    %886 = vmatpush.bf16.msra.mxu0 0
    %887 = vmatpush.bf16.msra.mxu0 0
    %888 = vmatpush.bf16.msra.mxu0 0
    %889 = vmatpush.bf16.msra.mxu0 %v881
    %890 = vmatmul.bf16.gmra.mxu0 %v703
    %v891 = vpop.f32.mrf.mxu0
    %v892 = vadd.f32 0.0, %v891
    %v893 = vpop.f32.mrf.mxu0
    %v894 = vadd.f32 0.0, %v893
    %895 = vdwg.mxu0
    %896 = vmatpush.msra.mxu0 %v539
    %897 = vmatpush.msra.mxu0 %v538
    %898 = vmatpush.msra.mxu0 %v537
    %899 = vmatpush.msra.mxu0 %v536
    %900 = vmatpush.msra.mxu0 %v535
    %901 = vmatpush.msra.mxu0 %v534
    %902 = vmatpush.msra.mxu0 %v533
    %903 = vmatpush.msra.mxu0 %v532
    %904 = vmatpush.msra.mxu0 %v531
    %905 = vmatpush.msra.mxu0 %v530
    %906 = vmatpush.msra.mxu0 %v529
    %907 = vmatpush.msra.mxu0 %v528
    %908 = vmatpush.msra.mxu0 %v527
    %909 = vmatpush.msra.mxu0 %v526
    %910 = vmatpush.msra.mxu0 %v525
    %911 = vmatpush.msra.mxu0 %v524
    %912 = vmatmul.f32.gmra.mxu0 %v892
    %v913 = vpop.f32.mrf.mxu0
    %v914 = vadd.f32 %v720, %v913
    %915 = vmatmul.f32.gmra.mxu0 %v894
    %v916 = vpop.f32.mrf.mxu0
    %v917 = vadd.f32 %v720, %v916
    %918 = vdwg.mxu0
    %v919 = vtanh.pop %v914
    %v920 = vtanh.pop %v917
    %v921 = vmul.f32 %v919, %v748
    %v922 = vmul.f32 %v920, %v748
    %923 = vadd.xlane.f32.xlu0 %v921
    %v924 = vpop.xlane.xlu0 %923
    %925 = vadd.xlane.f32.xlu0 %v922
    %v926 = vpop.xlane.xlu0 %925
    %v927 = vmul.f32 %v924, 0.17677669
    %v928 = vmul.f32 %v926, 0.17677669
    %v929 = vadd.f32 %v509, %v778
    %v930 = vadd.f32 %v510, %v780
    %v931 = vpack.c.bf16 %v929, %v929
    %v932 = vpack.c.bf16 %v930, %v930
    %v935 = vunpack.c.l.b16 %v931
    %v936 = vunpack.c.l.b16 %v932
    %v937 = vpack.c.b16 %v936, %v935
    %939 = vmatpush.bf16.msra.mxu0 0
    %940 = vmatpush.bf16.msra.mxu0 0
    %941 = vmatpush.bf16.msra.mxu0 0
    %942 = vmatpush.bf16.msra.mxu0 0
    %943 = vmatpush.bf16.msra.mxu0 0
    %944 = vmatpush.bf16.msra.mxu0 0
    %945 = vmatpush.bf16.msra.mxu0 0
    %946 = vmatpush.bf16.msra.mxu0 %v937
    %947 = vmatmul.bf16.gmra.mxu0 %v549
    %v948 = vpop.f32.mrf.mxu0
    %v949 = vadd.f32 0.0, %v948
    %v950 = vpop.f32.mrf.mxu0
    %v951 = vadd.f32 0.0, %v950
    %952 = vdwg.mxu0
    %s953 = scalar_lea.vmem [#allocation2], 16
    %954 = vst [vmem:[%s953] sm:$0xf] %v931
    %955 = vst [vmem:[%s953 + $0x4] sm:$0xf] %v932
    %v956 = vmul.f32 %v949, %v592
    %v957 = vmul.f32 %v951, %v592
    %v958 = vmul.f32 %v929, %v597
    %v959 = vmul.f32 %v930, %v597
    %v960 = vadd.f32 %v956, %v958
    %v961 = vadd.f32 %v957, %v959
    %962 = vadd.xlane.f32.xlu0 %v960
    %v963 = vpop.xlane.xlu0 %962
    %964 = vadd.xlane.f32.xlu0 %v961
    %v965 = vpop.xlane.xlu0 %964
    %v966 = vadd.f32 %v963, %v608
    %v967 = vadd.f32 %v965, %v608
    %969 = vset.pattern.permute.xlu0 0
    %970 = vperm.xlu0 %969, %v966
    %v971 = vpop.permute.xlu0 %970
    %974 = vset.pattern.permute.xlu0 0
    %975 = vperm.xlu0 %974, %v967
    %v976 = vpop.permute.xlu0 %975
    %v978 = vsel %vm519, %v971, -1e+30
    %v979 = vsel %vm520, %v976, -1e+30
    %v980 = vsel %vm467, %v978, -inf
    %v981 = vsel %vm467, %v979, -inf
    %v982 = vmax.f32 %v980, %v981
    %v983 = vrot.slane %v982, 4
    %v984 = vmax.f32 %v982, %v983
    %v985 = vrot.slane %v984, 2
    %v986 = vmax.f32 %v984, %v985
    %v987 = vrot.slane %v986, 1
    %v988 = vmax.f32 %v986, %v987
    %v989 = vsel %vm519, %v988, 0.0
    %v990 = vsel %vm520, %v988, 0.0
    %v991 = vsel %vm467, %v989, 0.0
    %992 = vadd.xlane.f32.xlu0 %v991
    %v993 = vpop.xlane.xlu0 %992
    %v994 = vsel %vm467, %v990, 0.0
    %995 = vadd.xlane.f32.xlu0 %v994
    %v996 = vpop.xlane.xlu0 %995
    %v997 = vsub.f32 %v966, %v993
    %v998 = vsub.f32 %v967, %v996
    %v999 = vmul.f32 %v997, 1.442695
    %v1000 = vpow.pop %v999
    %v1001 = vmul.f32 %v998, 1.442695
    %v1002 = vpow.pop %v1001
    %1004 = vset.pattern.permute.xlu0 0
    %1005 = vperm.xlu0 %1004, %v1000
    %v1006 = vpop.permute.xlu0 %1005
    %1009 = vset.pattern.permute.xlu0 0
    %1010 = vperm.xlu0 %1009, %v1002
    %v1011 = vpop.permute.xlu0 %1010
    %v1013 = vsel %vm519, %v1006, 0.0
    %v1014 = vsel %vm520, %v1011, 0.0
    %v1015 = vsel %vm467, %v1013, 0.0
    %v1016 = vsel %vm467, %v1014, 0.0
    %v1017 = vadd.f32 %v1015, %v1016
    %v1018 = vrot.slane %v1017, 4
    %v1019 = vadd.f32 %v1017, %v1018
    %v1020 = vrot.slane %v1019, 2
    %v1021 = vadd.f32 %v1019, %v1020
    %v1022 = vrot.slane %v1021, 1
    %v1023 = vadd.f32 %v1021, %v1022
    %v1024 = vsel %vm519, %v1023, 0.0
    %v1025 = vsel %vm520, %v1023, 0.0
    %v1026 = vsel %vm467, %v1024, 0.0
    %1027 = vadd.xlane.f32.xlu0 %v1026
    %v1028 = vpop.xlane.xlu0 %1027
    %v1029 = vsel %vm467, %v1025, 0.0
    %1030 = vadd.xlane.f32.xlu0 %v1029
    %v1031 = vpop.xlane.xlu0 %1030
    %vm1032 = vcmp.gt.f32.partialorder %v1028, 0.0
    %vm1033 = vcmp.gt.f32.partialorder %v1031, 0.0
    %v1034 = vrcp.pop %v1028
    %v1035 = vrcp.pop %v1031
    %v1036 = vsel %vm1032, %v1034, 0.0
    %v1037 = vsel %vm1033, %v1035, 0.0
    %v1038 = vmul.f32 %v1000, %v1036
    %v1039 = vmul.f32 %v1002, %v1037
    %1041 = vset.pattern.permute.xlu0 0
    %1042 = vperm.xlu0 %1041, %v1038
    %v1043 = vpop.permute.xlu0 %1042
    %1046 = vset.pattern.permute.xlu0 0
    %1047 = vperm.xlu0 %1046, %v1039
    %v1048 = vpop.permute.xlu0 %1047
    %v1050 = vmul.f32 %v929, %v1043
    %v1051 = vmul.f32 %v930, %v1048
    %v1052 = vpack.c.bf16 %v1051, %v1050
    %1053 = vmatpush.bf16.msra.mxu0 0
    %1054 = vmatpush.bf16.msra.mxu0 0
    %1055 = vmatpush.bf16.msra.mxu0 0
    %1056 = vmatpush.bf16.msra.mxu0 0
    %1057 = vmatpush.bf16.msra.mxu0 0
    %1058 = vmatpush.bf16.msra.mxu0 0
    %1059 = vmatpush.bf16.msra.mxu0 0
    %1060 = vmatpush.bf16.msra.mxu0 %v1052
    %1061 = vmatmul.bf16.gmra.mxu0 %v703
    %v1062 = vpop.f32.mrf.mxu0
    %v1063 = vadd.f32 0.0, %v1062
    %v1064 = vpop.f32.mrf.mxu0
    %v1065 = vadd.f32 0.0, %v1064
    %1066 = vdwg.mxu0
    %1067 = vmatpush.msra.mxu0 %v539
    %1068 = vmatpush.msra.mxu0 %v538
    %1069 = vmatpush.msra.mxu0 %v537
    %1070 = vmatpush.msra.mxu0 %v536
    %1071 = vmatpush.msra.mxu0 %v535
    %1072 = vmatpush.msra.mxu0 %v534
    %1073 = vmatpush.msra.mxu0 %v533
    %1074 = vmatpush.msra.mxu0 %v532
    %1075 = vmatpush.msra.mxu0 %v531
    %1076 = vmatpush.msra.mxu0 %v530
    %1077 = vmatpush.msra.mxu0 %v529
    %1078 = vmatpush.msra.mxu0 %v528
    %1079 = vmatpush.msra.mxu0 %v527
    %1080 = vmatpush.msra.mxu0 %v526
    %1081 = vmatpush.msra.mxu0 %v525
    %1082 = vmatpush.msra.mxu0 %v524
    %1083 = vmatmul.f32.gmra.mxu0 %v1063
    %v1084 = vpop.f32.mrf.mxu0
    %v1085 = vadd.f32 %v720, %v1084
    %1086 = vmatmul.f32.gmra.mxu0 %v1065
    %v1087 = vpop.f32.mrf.mxu0
    %v1088 = vadd.f32 %v720, %v1087
    %1089 = vdwg.mxu0
    %v1090 = vtanh.pop %v1085
    %v1091 = vtanh.pop %v1088
    %v1092 = vmul.f32 %v1090, %v748
    %v1093 = vmul.f32 %v1091, %v748
    %1094 = vadd.xlane.f32.xlu0 %v1092
    %v1095 = vpop.xlane.xlu0 %1094
    %1096 = vadd.xlane.f32.xlu0 %v1093
    %v1097 = vpop.xlane.xlu0 %1096
    %v1098 = vmul.f32 %v1095, 0.17677669
    %v1099 = vmul.f32 %v1097, 0.17677669
    %v1100 = vlaneseq
    %v1101 = vand.u32 %v1100, 127
    %vm1102 = vcmp.eq.s32.totalorder %v1101, 0
    %v1103 = vsel %vm1102, %v756, 0.0
    %v1104 = vsel %vm1102, %v757, 0.0
    %vm1105 = vcmp.eq.s32.totalorder %v1101, 1
    %v1106 = vsel %vm1105, %v927, %v1103
    %v1107 = vsel %vm1105, %v928, %v1104
    %vm1108 = vcmp.eq.s32.totalorder %v1101, 2
    %v1109 = vsel %vm1108, %v1098, %v1106
    %v1110 = vsel %vm1108, %v1099, %v1107
    %vm1111 = vcmask 23552
    %v1112 = vsel %vm1111, %v1109, -inf
    %1113 = vmax.xlane.f32.xlu0 %v1112
    %v1114 = vpop.xlane.xlu0 %1113
    %v1115 = vsel %vm1111, %v1110, -inf
    %1116 = vmax.xlane.f32.xlu0 %v1115
    %v1117 = vpop.xlane.xlu0 %1116
    %v1118 = vsub.f32 %v1109, %v1114
    %v1119 = vsub.f32 %v1110, %v1117
    %v1120 = vmul.f32 %v1118, 1.442695
    %v1121 = vpow.pop %v1120
    %v1122 = vmul.f32 %v1119, 1.442695
    %v1123 = vpow.pop %v1122
    %v1124 = vsel %vm1111, %v1121, 0.0
    %1125 = vadd.xlane.f32.xlu0 %v1124
    %v1126 = vpop.xlane.xlu0 %1125
    %v1127 = vsel %vm1111, %v1123, 0.0
    %1128 = vadd.xlane.f32.xlu0 %v1127
    %v1129 = vpop.xlane.xlu0 %1128
    %v1130 = vrcp.pop %v1126
    %v1131 = vrcp.pop %v1129
    %v1132 = vmul.f32 %v1121, %v1130
    %v1133 = vmul.f32 %v1123, %v1131
    %v1134 = vld [vmem:[#allocation27] sm:$0xf]
    %v1135 = vld [vmem:[#allocation27 + $0x4] sm:$0xf]
    %v1136 = vpack.c.bf16 %v1133, %v1132
    %v1139 = vunpack.c.l.b16 %v1134
    %v1140 = vunpack.c.l.b16 %v1135
    %v1141 = vpack.c.b16 %v1140, %v1139
    %v1143 = vsel %vm467, %v1141, 0
    %1145 = vmatpush.bf16.msra.mxu0 0
    %1146 = vmatpush.bf16.msra.mxu0 0
    %1147 = vmatpush.bf16.msra.mxu0 0
    %1148 = vmatpush.bf16.msra.mxu0 0
    %1149 = vmatpush.bf16.msra.mxu0 0
    %1150 = vmatpush.bf16.msra.mxu0 0
    %1151 = vmatpush.bf16.msra.mxu0 0
    %1152 = vmatpush.bf16.msra.mxu0 %v1136
    %1153 = vmatmul.bf16.gmra.mxu0 %v1143
    %v1154 = vpop.f32.mrf.mxu0
    %v1155 = vadd.f32 0.0, %v1154
    %v1156 = vpop.f32.mrf.mxu0
    %v1157 = vadd.f32 0.0, %v1156
    %1158 = vdwg.mxu0
    %v1159 = vsel %vm1102, 1, 0
    %vm1160 = vcmp.eq.s32.totalorder %v1159, 1
    %v1161 = vsel %vm1160, %v1155, 0.0
    %v1162 = vsel %vm1160, %v1157, 0.0
    %v1163 = vsel %vm1111, %v1161, 0.0
    %1164 = vadd.xlane.f32.xlu0 %v1163
    %v1165 = vpop.xlane.xlu0 %1164
    %v1166 = vsel %vm1111, %v1162, 0.0
    %1167 = vadd.xlane.f32.xlu0 %v1166
    %v1168 = vpop.xlane.xlu0 %1167
    %v1169 = vld [vmem:[#allocation2] sm:$0xf]
    %v1170 = vld [vmem:[#allocation2 + $0x4] sm:$0xf]
    %v1171 = vunpack.c.l.bf16 %v1169
    %v1172 = vunpack.c.l.bf16 %v1170
    %v1173 = vmul.f32 %v1171, %v1165
    %v1174 = vmul.f32 %v1172, %v1168
    %v1175 = vadd.f32 %v1173, 0.0
    %v1176 = vadd.f32 %v1174, 0.0
    %v1177 = vsel %vm1105, 1, 0
    %vm1178 = vcmp.eq.s32.totalorder %v1177, 1
    %v1179 = vsel %vm1178, %v1155, 0.0
    %v1180 = vsel %vm1178, %v1157, 0.0
    %v1181 = vsel %vm1111, %v1179, 0.0
    %1182 = vadd.xlane.f32.xlu0 %v1181
    %v1183 = vpop.xlane.xlu0 %1182
    %v1184 = vsel %vm1111, %v1180, 0.0
    %1185 = vadd.xlane.f32.xlu0 %v1184
    %v1186 = vpop.xlane.xlu0 %1185
    %v1187 = vld [vmem:[%s782] sm:$0xf]
    %v1188 = vld [vmem:[%s782 + $0x4] sm:$0xf]
    %v1189 = vunpack.c.l.bf16 %v1187
    %v1190 = vunpack.c.l.bf16 %v1188
    %v1191 = vmul.f32 %v1189, %v1183
    %v1192 = vmul.f32 %v1190, %v1186
    %v1193 = vadd.f32 %v1175, %v1191
    %v1194 = vadd.f32 %v1176, %v1192
    %v1195 = vsel %vm1108, 1, 0
    %vm1196 = vcmp.eq.s32.totalorder %v1195, 1
    %v1197 = vsel %vm1196, %v1155, 0.0
    %v1198 = vsel %vm1196, %v1157, 0.0
    %v1199 = vsel %vm1111, %v1197, 0.0
    %1200 = vadd.xlane.f32.xlu0 %v1199
    %v1201 = vpop.xlane.xlu0 %1200
    %v1202 = vsel %vm1111, %v1198, 0.0
    %1203 = vadd.xlane.f32.xlu0 %v1202
    %v1204 = vpop.xlane.xlu0 %1203
    %v1205 = vld [vmem:[%s953] sm:$0xf]
    %v1206 = vld [vmem:[%s953 + $0x4] sm:$0xf]
    %v1207 = vunpack.c.l.bf16 %v1205
    %v1208 = vunpack.c.l.bf16 %v1206
    %v1209 = vmul.f32 %v1207, %v1201
    %v1210 = vmul.f32 %v1208, %v1204
    %v1211 = vadd.f32 %v1193, %v1209
    %v1212 = vadd.f32 %v1194, %v1210
    %v1213 = vld [vmem:[#allocation24] sm:$0xf]
    %v1214 = vld [vmem:[#allocation24 + $0x4] sm:$0xf]
    %v1215 = vpack.c.bf16 %v1212, %v1211
    %v1218 = vunpack.c.l.b16 %v1213
    %v1219 = vunpack.c.l.b16 %v1214
    %v1220 = vpack.c.b16 %v1219, %v1218
    %v1222 = vsel %vm467, %v1220, 0
    %1224 = vmatpush.bf16.msra.mxu0 0
    %1225 = vmatpush.bf16.msra.mxu0 0
    %1226 = vmatpush.bf16.msra.mxu0 0
    %1227 = vmatpush.bf16.msra.mxu0 0
    %1228 = vmatpush.bf16.msra.mxu0 0
    %1229 = vmatpush.bf16.msra.mxu0 0
    %1230 = vmatpush.bf16.msra.mxu0 0
    %1231 = vmatpush.bf16.msra.mxu0 %v1215
    %1232 = vmatmul.bf16.gmra.mxu0 %v1222
    %v1233 = vpop.f32.mrf.mxu0
    %v1234 = vadd.f32 0.0, %v1233
    %v1235 = vpop.f32.mrf.mxu0
    %v1236 = vadd.f32 0.0, %v1235
    %1237 = vdwg.mxu0
    %v1238 = vadd.f32 %v335, %v1234
    %v1239 = vadd.f32 %v336, %v1236
    %1240 = vst [vmem:[#allocation28] sm:$0xff] %v1238
    %1241 = vst [vmem:[#allocation28 + $0x8] sm:$0xff] %v1239
    // Predicated region
    $region134: #{tpu_custom_call.1} parent=1 // pred_check
      _
    $region135: #{tpu_custom_call.1} parent=1 // pred_check_branch
      %1243 = sbr.rel (0) target = $region137
    $region136: #{tpu_custom_call.1} parent=1 // pred_region
      %1245 = vsyncadd [#allocation6], 0
      %s1246 = sshll.u32 [#allocation28], 4
      %s1247 = int_to_ptr.vmem [resolvable:$true] %s1246
      %s1248 = sshll.u32 %s18, 4
      %s1249 = int_to_ptr.hbm [resolvable:$true] %s1248
      %1254 = dma.vmem_to_hbm [thread:$0]  %s1247, 256, %s1249, [#allocation6], 128, 128, 8
    $region137: #{tpu_custom_call.1} parent=1 // pred_fallthru
      _
    // Predicated region
    $region138: #{tpu_custom_call.1} parent=1 // pred_check
      _
    $region139: #{tpu_custom_call.1} parent=1 // pred_check_branch
      %1256 = sbr.rel (0) target = $region141
    $region140: #{tpu_custom_call.1} parent=1 // pred_region
      %1258 = dma.done [#allocation6], 256
    $region141: #{tpu_custom_call.1} parent=1 // pred_fallthru
      _
    %1259 = vsyncpa [#allocation5], 1
    %1260 = vsyncpa [#allocation8], 1
    %1261 = vsyncpa [#allocation11], 1
    %1262 = vsyncpa [#allocation14], 1
    %1263 = vsyncpa [#allocation17], 1
    %1264 = vsyncpa [#allocation20], 1
    %1265 = vsyncpa [#allocation23], 1
    %1266 = vsyncpa [#allocation26], 1
    %1267 = vsyncpa [#allocation6], 1

</llo_original>
